<compile_context>
chip_gen: v7x
topology: tpu7x:2x2x1
jax: 0.10.0
libtpu: 0.0.40
codegen_flags: <defaults>
</compile_context>

<pallas_src>
import jax
import jax.numpy as jnp
from jax.experimental import pallas as pl
from jax.experimental.pallas import tpu as pltpu


# ------------------------------ graph constants ----------------------------- #

NODE_TYPES = ("news", "topic", "entities", "kg_entities")
TYPE_IDX = {nt: i for i, nt in enumerate(NODE_TYPES)}

EDGE_TYPES = (
    ("news", "on", "topic"),
    ("topic", "in", "news"),
    ("news", "has", "entities"),
    ("entities", "in", "news"),
    ("entities", "similar", "entities"),
    ("kg_entities", "in", "news"),
    ("news", "has", "kg_entities"),
    ("kg_entities", "to", "entities"),
)

# Relation processing order: grouped by destination node type (contiguous for
# the resident accumulator), and within/between groups ordered so adjacent grid
# steps reuse the same source feature block when possible.
REL_ORDER = (
    ("news", "on", "topic"),              # dst=topic        src=news
    ("news", "has", "kg_entities"),       # dst=kg_entities  src=news   (reuse)
    ("topic", "in", "news"),              # dst=news         src=topic
    ("entities", "in", "news"),           #                  src=entities
    ("kg_entities", "in", "news"),        #                  src=kg_entities
    ("kg_entities", "to", "entities"),    # dst=entities     src=kg_entities (reuse)
    ("entities", "similar", "entities"),  #                  src=entities
    ("news", "has", "entities"),          #                  src=news
)


def _round_up(x, m):
    return (x + m - 1) // m * m


# ----------------------------- Pallas kernels ------------------------------ #

def layer_kernel(dst_id_ref, src_id_ref, first_ref, last_ref,      # scalar prefetch (SMEM)
                 att_ref, xs_ref, xd_ref, msk_ref, wl_ref, wr_ref, vec_ref,
                 out_ref, acc_ref):
    """One grid step = one relation.  Relations targeting the same dst node
    type are contiguous: zero the f32 scratch on the first, accumulate the
    relation's GATv2 output (HeteroConv 'sum'), and write ReLU(acc) as bf16 on
    the last."""
    r = pl.program_id(0)

    @pl.when(first_ref[r] == 1)
    def _init():
        acc_ref[...] = jnp.zeros_like(acc_ref)

    x_src = xs_ref[0]                              # [Np, F]  bf16 (zero-padded)
    x_dst = xd_ref[0]                              # [Np, F]  bf16
    mask_f = msk_ref[0].astype(jnp.float32)        # [Np, Np] 0/1

    bl = vec_ref[0, 0:1, :]                        # [1, H] f32
    br = vec_ref[0, 1:2, :]
    bias = vec_ref[0, 2:3, :]

    # Projections (bf16 MXU, f32 accumulation).
    xl = jnp.dot(x_src, wl_ref[0], preferred_element_type=jnp.float32) + bl   # [Np, H]
    xr = jnp.dot(x_dst, wr_ref[0], preferred_element_type=jnp.float32) + br   # [Np, H]

    n, h_dim = xr.shape

    # 2D score accumulation: e[i, j] = sum_h att[h] * leaky_relu(xr[i,h] + xl[j,h]).
    # Source nodes stay on the lane axis; no [Np, Np, H] intermediate and no
    # cross-lane reduce over H.  leaky_relu as max(z, 0.2z) (no compare+select).
    xl_t = xl.T                                    # [H, Np]
    e = jnp.zeros((n, n), jnp.float32)
    for h in range(h_dim):                         # static unroll, H is trace-time const
        z = xr[:, h:h + 1] + xl_t[h:h + 1, :]      # [Np, Np] via broadcast
        e = e + att_ref[r, h] * jnp.maximum(z, 0.2 * z)
    # TODO(synk): for real tile sizes switch to lax.fori_loop(0, H, ..., unroll=8)
    #             to bound vreg live ranges.

    # Masked softmax over source nodes (per destination row), f32 statistics.
    e_m = jnp.where(mask_f > 0, e, jnp.float32(-1e30))
    m = jnp.max(e_m, axis=1, keepdims=True)
    p = jnp.exp(e_m - m) * mask_f                  # multiply by 0/1 mask (no 2nd select)
    denom = jnp.sum(p, axis=1, keepdims=True)
    alpha = p * pl.reciprocal(jnp.maximum(denom, jnp.float32(1e-30)), approx=True)

    # Weighted aggregation (bf16 MXU) + conv bias; accumulate across relations
    # targeting this dst type (HeteroConv 'sum') in f32 scratch.
    acc_ref[...] += (
        jnp.dot(alpha.astype(jnp.bfloat16), xl.astype(jnp.bfloat16),
                preferred_element_type=jnp.float32) + bias)

    @pl.when(last_ref[r] == 1)
    def _finalize():
        out_ref[0] = jnp.maximum(acc_ref[...], 0.0).astype(out_ref.dtype)  # layer ReLU


def linear_kernel(x_ref, w_ref, b_ref, out_ref):
    out_ref[...] = jnp.dot(x_ref[...], w_ref[...],
                           preferred_element_type=jnp.float32) + b_ref[...]


# ------------------------------- wrappers ----------------------------------- #

_VMEM = pl.BlockSpec(memory_space=pltpu.MemorySpace.VMEM)
_SMEM = pl.BlockSpec(memory_space=pltpu.MemorySpace.SMEM)


def hetero_layer_pallas(dst_id, src_id, is_first, is_last, att, x_all, msk, wl, wr, vec):
    """One full HeteroConv layer (all 8 relations) in a single pallas_call."""
    n_types, n_pad, f_pad = x_all.shape
    n_rel, _, hc = wl.shape

    grid_spec = pltpu.PrefetchScalarGridSpec(
        num_scalar_prefetch=4,                      # dst_id, src_id, is_first, is_last
        grid=(n_rel,),
        in_specs=[
            _SMEM,                                                                 # att [R, H]
            pl.BlockSpec((1, n_pad, f_pad), lambda r, d, s, f, l: (s[r], 0, 0)),   # x_src (per type)
            pl.BlockSpec((1, n_pad, f_pad), lambda r, d, s, f, l: (d[r], 0, 0)),   # x_dst (per type)
            pl.BlockSpec((1, n_pad, n_pad), lambda r, d, s, f, l: (r, 0, 0)),      # adjacency mask
            pl.BlockSpec((1, f_pad, hc),    lambda r, d, s, f, l: (r, 0, 0)),      # Wl
            pl.BlockSpec((1, f_pad, hc),    lambda r, d, s, f, l: (r, 0, 0)),      # Wr
            pl.BlockSpec((1, 8, hc),        lambda r, d, s, f, l: (r, 0, 0)),      # bl/br/bias pack
        ],
        out_specs=pl.BlockSpec((1, n_pad, hc), lambda r, d, s, f, l: (d[r], 0, 0)),
        scratch_shapes=[pltpu.VMEM((n_pad, hc), jnp.float32)],                     # f32 accumulator
    )
    return pl.pallas_call(
        layer_kernel,
        out_shape=jax.ShapeDtypeStruct((n_types, n_pad, hc), jnp.bfloat16),
        grid_spec=grid_spec,
        compiler_params=pltpu.CompilerParams(
            dimension_semantics=("arbitrary",)),     # relation axis accumulates
    )(dst_id, src_id, is_first, is_last, att, x_all, x_all, msk, wl, wr, vec)


def linear_pallas(x, w, b):
    return pl.pallas_call(
        linear_kernel,
        out_shape=jax.ShapeDtypeStruct((x.shape[0], w.shape[1]), jnp.float32),
        in_specs=[_VMEM] * 3,
        out_specs=_VMEM,
    )(x, w, b)


# --------------------- parameter / graph packing (setup) -------------------- #

def _glorot(key, shape):
    fan_in, fan_out = shape
    limit = (6.0 / (fan_in + fan_out)) ** 0.5
    return jax.random.uniform(key, shape, jnp.float32, -limit, limit)


def make_params(key, in_dims, hidden_channels, out_channels, num_layers):
    """Deterministic GATv2 params per layer/relation + final Linear."""
    params = []
    dims = dict(in_dims)
    hc = hidden_channels
    for _ in range(num_layers):
        layer_params = {}
        for et in EDGE_TYPES:
            src, _, dst = et
            key, k1, k2, k3, k4, k5, k6 = jax.random.split(key, 7)
            layer_params[et] = dict(
                wl=_glorot(k1, (dims[src], hc)),
                bl=0.01 * jax.random.normal(k2, (1, hc), jnp.float32),
                wr=_glorot(k3, (dims[dst], hc)),
                br=0.01 * jax.random.normal(k4, (1, hc), jnp.float32),
                att=_glorot(k5, (1, hc)),
                bias=0.01 * jax.random.normal(k6, (1, hc), jnp.float32),
            )
        params.append(layer_params)
        dims = {nt: hc for nt in NODE_TYPES}
        hc = int(hc / 2)
    final_hc = params[-1][EDGE_TYPES[0]]["wl"].shape[1]
    key, k1, k2 = jax.random.split(key, 3)
    lin = dict(w=_glorot(k1, (final_hc, out_channels)),
               b=0.01 * jax.random.normal(k2, (1, out_channels), jnp.float32))
    return params, lin


def build_schedule():
    """Per-relation scalar-prefetch arrays: dst type id, src type id, first/last
    flags for the resident accumulator (relations are grouped by dst type)."""
    dst = [TYPE_IDX[et[2]] for et in REL_ORDER]
    src = [TYPE_IDX[et[0]] for et in REL_ORDER]
    n_rel = len(REL_ORDER)
    first = [1 if i == 0 or dst[i] != dst[i - 1] else 0 for i in range(n_rel)]
    last = [1 if i == n_rel - 1 or dst[i] != dst[i + 1] else 0 for i in range(n_rel)]
    as_i32 = lambda a: jnp.asarray(a, jnp.int32)
    return as_i32(dst), as_i32(src), as_i32(first), as_i32(last)


def pack_layer_weights(layer_params, f_pad):
    """Pack one layer's per-relation weights once (setup time)."""
    n_rel = len(REL_ORDER)
    hc = layer_params[REL_ORDER[0]]["wl"].shape[1]
    wl = jnp.zeros((n_rel, f_pad, hc), jnp.bfloat16)
    wr = jnp.zeros((n_rel, f_pad, hc), jnp.bfloat16)
    vec = jnp.zeros((n_rel, 8, hc), jnp.float32)     # rows: 0=bl, 1=br, 2=bias
    att = jnp.zeros((n_rel, hc), jnp.float32)
    for i, et in enumerate(REL_ORDER):
        p = layer_params[et]
        wl = wl.at[i, :p["wl"].shape[0], :].set(p["wl"].astype(jnp.bfloat16))
        wr = wr.at[i, :p["wr"].shape[0], :].set(p["wr"].astype(jnp.bfloat16))
        vec = vec.at[i, 0, :].set(p["bl"][0])
        vec = vec.at[i, 1, :].set(p["br"][0])
        vec = vec.at[i, 2, :].set(p["bias"][0])
        att = att.at[i, :].set(p["att"][0])
    return dict(wl=wl, wr=wr, vec=vec, att=att)


def pack_all_layer_weights(params, in_dims):
    dims = dict(in_dims)
    packed = []
    for layer_params in params:
        hc = layer_params[REL_ORDER[0]]["wl"].shape[1]
        f_pad = _round_up(max(dims.values()), 8)
        packed.append(pack_layer_weights(layer_params, f_pad))
        dims = {nt: hc for nt in NODE_TYPES}
    return packed


def edge_index_to_mask(edge_index, n_src, n_dst):
    # dense adjacency mask [N_dst, N_src]; scatter done in plain JAX (graph-build glue).
    src, dst = edge_index[0], edge_index[1]
    return jnp.zeros((n_dst, n_src), jnp.float32).at[dst, src].set(1.0)


def pack_masks(mask_dict, n_pad):
    """Pack the dense adjacency masks once (graph-build time, layer-independent)."""
    n_rel = len(REL_ORDER)
    msk = jnp.zeros((n_rel, n_pad, n_pad), jnp.bfloat16)
    for i, et in enumerate(REL_ORDER):
        m = mask_dict[et]
        msk = msk.at[i, :m.shape[0], :m.shape[1]].set(m.astype(jnp.bfloat16))
    return msk


def pack_node_features(x_dict, n_pad, f_pad):
    """Pack initial (layer-0) node features once per forward into one bf16 slab."""
    x_all = jnp.zeros((len(NODE_TYPES), n_pad, f_pad), jnp.bfloat16)
    for i, nt in enumerate(NODE_TYPES):
        x = x_dict[nt]
        x_all = x_all.at[i, :x.shape[0], :x.shape[1]].set(x.astype(jnp.bfloat16))
    return x_all


# ------------------------------ forward pass -------------------------------- #

def hetero_gnn_forward(x_all, schedule, msk, packed_layers, lin_params, num_news):
    dst_id, src_id, is_first, is_last = schedule
    for lp in packed_layers:
        # Layer output [T, N_pad, H] bf16 is directly the next layer's input.
        x_all = hetero_layer_pallas(dst_id, src_id, is_first, is_last,
                                    lp["att"], x_all, msk,
                                    lp["wl"], lp["wr"], lp["vec"])
    news = x_all[TYPE_IDX["news"], :num_news, :]
    return linear_pallas(news,
                         lin_params["w"].astype(jnp.bfloat16),
                         lin_params["b"])


# ---------------------------------- main ------------------------------------ #

if __name__ == "__main__":
    key = jax.random.PRNGKey(0)

    # small synthetic hetero-graph
    num_nodes = {"news": 8, "topic": 6, "entities": 10, "kg_entities": 4}
    in_dims = {"news": 12, "topic": 10, "entities": 14, "kg_entities": 8}
    hidden_channels, out_channels, num_layers = 32, 8, 2

    n_pad = _round_up(max(num_nodes.values()), 8)
    f_pad0 = _round_up(max(in_dims.values()), 8)

    # node features
    x_dict = {}
    for nt in NODE_TYPES:
        key, k = jax.random.split(key)
        x_dict[nt] = jax.random.normal(k, (num_nodes[nt], in_dims[nt]), jnp.float32)

    # random sparse edge indices, densified to adjacency masks (graph-build time)
    mask_dict = {}
    for et in EDGE_TYPES:
        src, _, dst = et
        n_e = 2 * max(num_nodes[src], num_nodes[dst])
        key, k1, k2 = jax.random.split(key, 3)
        src_idx = jax.random.randint(k1, (n_e,), 0, num_nodes[src])
        dst_idx = jax.random.randint(k2, (n_e,), 0, num_nodes[dst])
        edge_index = jnp.stack([src_idx, dst_idx], axis=0)   # [2, E]
        mask_dict[et] = edge_index_to_mask(edge_index, num_nodes[src], num_nodes[dst])

    # deterministic parameters, packed once at setup time
    key, kp = jax.random.split(key)
    params, lin_params = make_params(kp, in_dims, hidden_channels,
                                     out_channels, num_layers)
    packed_layers = pack_all_layer_weights(params, in_dims)
    schedule = build_schedule()
    msk = pack_masks(mask_dict, n_pad)
    x_all0 = pack_node_features(x_dict, n_pad, f_pad0)

    out = hetero_gnn_forward(x_all0, schedule, msk, packed_layers,
                             lin_params, num_nodes["news"])
    out = jax.block_until_ready(out)
    assert out.shape == (num_nodes["news"], out_channels)
    assert jnp.all(jnp.isfinite(out))
    print("KERNEL_OK")
</pallas_src>

<mosaic_0001>
module attributes {stable_mosaic.version = 11 : i64} {
  func.func @layer_kernel(%arg0: i32, %arg1: memref<8xi32, #tpu.memory_space<smem>>, %arg2: memref<8xi32, #tpu.memory_space<smem>>, %arg3: memref<8xi32, #tpu.memory_space<smem>>, %arg4: memref<8xi32, #tpu.memory_space<smem>>, %arg5: memref<8x32xf32, #tpu.memory_space<smem>>, %arg6: memref<1x16x16xbf16, #tpu.memory_space<vmem>>, %arg7: memref<1x16x16xbf16, #tpu.memory_space<vmem>>, %arg8: memref<1x16x16xbf16, #tpu.memory_space<vmem>>, %arg9: memref<1x16x32xbf16, #tpu.memory_space<vmem>>, %arg10: memref<1x16x32xbf16, #tpu.memory_space<vmem>>, %arg11: memref<1x8x32xf32, #tpu.memory_space<vmem>>, %arg12: memref<1x16x32xbf16, #tpu.memory_space<vmem>>, %arg13: memref<16x32xf32, #tpu.memory_space<vmem>>) attributes {dimension_semantics = [#tpu.dimension_semantics<arbitrary>], iteration_bounds = array<i64: 8>, scalar_prefetch = 4 : i64, scratch_operands = 1 : i64, tpu.core_type = #tpu.core_type<tc>, window_params = [{transform_indices = @transform_0, window_bounds = array<i64: 8, 32>}, {transform_indices = @transform_1, window_bounds = array<i64: 1, 16, 16>}, {transform_indices = @transform_2, window_bounds = array<i64: 1, 16, 16>}, {transform_indices = @transform_3, window_bounds = array<i64: 1, 16, 16>}, {transform_indices = @transform_4, window_bounds = array<i64: 1, 16, 32>}, {transform_indices = @transform_5, window_bounds = array<i64: 1, 16, 32>}, {transform_indices = @transform_6, window_bounds = array<i64: 1, 8, 32>}, {transform_indices = @transform_7, window_bounds = array<i64: 1, 16, 32>}]} {
    %0 = arith.index_cast %arg0 : i32 to index
    %1 = memref.load %arg3[%0] : memref<8xi32, #tpu.memory_space<smem>>
    %c1_i32 = arith.constant 1 : i32
    %2 = arith.cmpi eq, %1, %c1_i32 : i32
    %3 = arith.extui %2 : i1 to i32
    %c0_i32 = arith.constant 0 : i32
    %4 = arith.cmpi ne, %3, %c0_i32 : i32
    scf.if %4 {
      %cst_70 = arith.constant 0.000000e+00 : f32
      %476 = vector.broadcast %cst_70 : f32 to vector<16x32xf32>
      %c0_71 = arith.constant 0 : index
      %c0_72 = arith.constant 0 : index
      %477 = vector.load %arg13[%c0_71, %c0_72] : memref<16x32xf32, #tpu.memory_space<vmem>>, vector<16x32xf32>
      tpu.vector_store %arg13[%c0_71, %c0_72], %476 {strides = array<i32>} : memref<16x32xf32, #tpu.memory_space<vmem>>, vector<16x32xf32>,
    } else {
    }
    %c0 = arith.constant 0 : index
    %c0_0 = arith.constant 0 : index
    %c0_1 = arith.constant 0 : index
    %5 = vector.load %arg6[%c0, %c0_0, %c0_1] : memref<1x16x16xbf16, #tpu.memory_space<vmem>>, vector<1x16x16xbf16>
    %6 = vector.shape_cast %5 : vector<1x16x16xbf16> to vector<16x16xbf16>
    %c0_2 = arith.constant 0 : index
    %c0_3 = arith.constant 0 : index
    %c0_4 = arith.constant 0 : index
    %7 = vector.load %arg7[%c0_2, %c0_3, %c0_4] : memref<1x16x16xbf16, #tpu.memory_space<vmem>>, vector<1x16x16xbf16>
    %8 = vector.shape_cast %7 : vector<1x16x16xbf16> to vector<16x16xbf16>
    %c0_5 = arith.constant 0 : index
    %c0_6 = arith.constant 0 : index
    %c0_7 = arith.constant 0 : index
    %9 = vector.load %arg8[%c0_5, %c0_6, %c0_7] : memref<1x16x16xbf16, #tpu.memory_space<vmem>>, vector<1x16x16xbf16>
    %10 = vector.shape_cast %9 : vector<1x16x16xbf16> to vector<16x16xbf16>
    %11 = arith.extf %10 : vector<16x16xbf16> to vector<16x16xf32>
    %c0_8 = arith.constant 0 : index
    %c0_9 = arith.constant 0 : index
    %c0_10 = arith.constant 0 : index
    %12 = vector.load %arg11[%c0_8, %c0_9, %c0_10] : memref<1x8x32xf32, #tpu.memory_space<vmem>>, vector<1x1x32xf32>
    %13 = vector.shape_cast %12 : vector<1x1x32xf32> to vector<1x32xf32>
    %c0_11 = arith.constant 0 : index
    %c1 = arith.constant 1 : index
    %c0_12 = arith.constant 0 : index
    %14 = vector.load %arg11[%c0_11, %c1, %c0_12] : memref<1x8x32xf32, #tpu.memory_space<vmem>>, vector<1x1x32xf32>
    %15 = vector.shape_cast %14 : vector<1x1x32xf32> to vector<1x32xf32>
    %c0_13 = arith.constant 0 : index
    %c2 = arith.constant 2 : index
    %c0_14 = arith.constant 0 : index
    %16 = vector.load %arg11[%c0_13, %c2, %c0_14] : memref<1x8x32xf32, #tpu.memory_space<vmem>>, vector<1x1x32xf32>
    %17 = vector.shape_cast %16 : vector<1x1x32xf32> to vector<1x32xf32>
    %c0_15 = arith.constant 0 : index
    %c0_16 = arith.constant 0 : index
    %c0_17 = arith.constant 0 : index
    %18 = vector.load %arg9[%c0_15, %c0_16, %c0_17] : memref<1x16x32xbf16, #tpu.memory_space<vmem>>, vector<1x16x32xbf16>
    %19 = vector.shape_cast %18 : vector<1x16x32xbf16> to vector<16x32xbf16>
    %cst = arith.constant dense<0.000000e+00> : vector<16x32xf32>
    %20 = tpu.matmul %6, %19, %cst {dimension_numbers = #tpu.dot_dimension_numbers<[1], [0], [0], [1], [0, 0, 1, 1], [], []>} : vector<16x16xbf16>, vector<16x32xbf16>, vector<16x32xf32> -> vector<16x32xf32>
    %21 = vector.broadcast %13 : vector<1x32xf32> to vector<16x32xf32>
    %22 = arith.addf %20, %21 : vector<16x32xf32>
    %c0_18 = arith.constant 0 : index
    %c0_19 = arith.constant 0 : index
    %c0_20 = arith.constant 0 : index
    %23 = vector.load %arg10[%c0_18, %c0_19, %c0_20] : memref<1x16x32xbf16, #tpu.memory_space<vmem>>, vector<1x16x32xbf16>
    %24 = vector.shape_cast %23 : vector<1x16x32xbf16> to vector<16x32xbf16>
    %cst_21 = arith.constant dense<0.000000e+00> : vector<16x32xf32>
    %25 = tpu.matmul %8, %24, %cst_21 {dimension_numbers = #tpu.dot_dimension_numbers<[1], [0], [0], [1], [0, 0, 1, 1], [], []>} : vector<16x16xbf16>, vector<16x32xbf16>, vector<16x32xf32> -> vector<16x32xf32>
    %26 = vector.broadcast %15 : vector<1x32xf32> to vector<16x32xf32>
    %27 = arith.addf %25, %26 : vector<16x32xf32>
    %28 = tpu.transpose %22, [1, 0] : vector<16x32xf32> -> vector<32x16xf32>
    %cst_22 = arith.constant 0.000000e+00 : f32
    %29 = vector.broadcast %cst_22 : f32 to vector<16x16xf32>
    %30 = vector.extract_strided_slice %27 {offsets = [0, 0], sizes = [16, 1], strides = [1, 1]} : vector<16x32xf32> to vector<16x1xf32>
    %31 = vector.extract_strided_slice %28 {offsets = [0, 0], sizes = [1, 16], strides = [1, 1]} : vector<32x16xf32> to vector<1x16xf32>
    %32 = vector.broadcast %30 : vector<16x1xf32> to vector<16x16xf32>
    %33 = vector.broadcast %31 : vector<1x16xf32> to vector<16x16xf32>
    %34 = arith.addf %32, %33 : vector<16x16xf32>
    %35 = arith.index_cast %arg0 : i32 to index
    %c0_23 = arith.constant 0 : index
    %36 = memref.load %arg5[%35, %c0_23] : memref<8x32xf32, #tpu.memory_space<smem>>
    %cst_24 = arith.constant 2.000000e-01 : f32
    %37 = vector.broadcast %cst_24 : f32 to vector<16x16xf32>
    %38 = arith.mulf %37, %34 : vector<16x16xf32>
    %39 = arith.maximumf %34, %38 : vector<16x16xf32>
    %40 = vector.broadcast %36 : f32 to vector<16x16xf32>
    %41 = arith.mulf %40, %39 : vector<16x16xf32>
    %42 = arith.addf %29, %41 : vector<16x16xf32>
    %43 = vector.extract_strided_slice %27 {offsets = [0, 1], sizes = [16, 1], strides = [1, 1]} : vector<16x32xf32> to vector<16x1xf32>
    %44 = vector.extract_strided_slice %28 {offsets = [1, 0], sizes = [1, 16], strides = [1, 1]} : vector<32x16xf32> to vector<1x16xf32>
    %45 = vector.broadcast %43 : vector<16x1xf32> to vector<16x16xf32>
    %46 = vector.broadcast %44 : vector<1x16xf32> to vector<16x16xf32>
    %47 = arith.addf %45, %46 : vector<16x16xf32>
    %48 = arith.index_cast %arg0 : i32 to index
    %c1_25 = arith.constant 1 : index
    %49 = memref.load %arg5[%48, %c1_25] : memref<8x32xf32, #tpu.memory_space<smem>>
    %cst_26 = arith.constant 2.000000e-01 : f32
    %50 = vector.broadcast %cst_26 : f32 to vector<16x16xf32>
    %51 = arith.mulf %50, %47 : vector<16x16xf32>
    %52 = arith.maximumf %47, %51 : vector<16x16xf32>
    %53 = vector.broadcast %49 : f32 to vector<16x16xf32>
    %54 = arith.mulf %53, %52 : vector<16x16xf32>
    %55 = arith.addf %42, %54 : vector<16x16xf32>
    %56 = vector.extract_strided_slice %27 {offsets = [0, 2], sizes = [16, 1], strides = [1, 1]} : vector<16x32xf32> to vector<16x1xf32>
    %57 = vector.extract_strided_slice %28 {offsets = [2, 0], sizes = [1, 16], strides = [1, 1]} : vector<32x16xf32> to vector<1x16xf32>
    %58 = vector.broadcast %56 : vector<16x1xf32> to vector<16x16xf32>
    %59 = vector.broadcast %57 : vector<1x16xf32> to vector<16x16xf32>
    %60 = arith.addf %58, %59 : vector<16x16xf32>
    %61 = arith.index_cast %arg0 : i32 to index
    %c2_27 = arith.constant 2 : index
    %62 = memref.load %arg5[%61, %c2_27] : memref<8x32xf32, #tpu.memory_space<smem>>
    %cst_28 = arith.constant 2.000000e-01 : f32
    %63 = vector.broadcast %cst_28 : f32 to vector<16x16xf32>
    %64 = arith.mulf %63, %60 : vector<16x16xf32>
    %65 = arith.maximumf %60, %64 : vector<16x16xf32>
    %66 = vector.broadcast %62 : f32 to vector<16x16xf32>
    %67 = arith.mulf %66, %65 : vector<16x16xf32>
    %68 = arith.addf %55, %67 : vector<16x16xf32>
    %69 = vector.extract_strided_slice %27 {offsets = [0, 3], sizes = [16, 1], strides = [1, 1]} : vector<16x32xf32> to vector<16x1xf32>
    %70 = vector.extract_strided_slice %28 {offsets = [3, 0], sizes = [1, 16], strides = [1, 1]} : vector<32x16xf32> to vector<1x16xf32>
    %71 = vector.broadcast %69 : vector<16x1xf32> to vector<16x16xf32>
    %72 = vector.broadcast %70 : vector<1x16xf32> to vector<16x16xf32>
    %73 = arith.addf %71, %72 : vector<16x16xf32>
    %74 = arith.index_cast %arg0 : i32 to index
    %c3 = arith.constant 3 : index
    %75 = memref.load %arg5[%74, %c3] : memref<8x32xf32, #tpu.memory_space<smem>>
    %cst_29 = arith.constant 2.000000e-01 : f32
    %76 = vector.broadcast %cst_29 : f32 to vector<16x16xf32>
    %77 = arith.mulf %76, %73 : vector<16x16xf32>
    %78 = arith.maximumf %73, %77 : vector<16x16xf32>
    %79 = vector.broadcast %75 : f32 to vector<16x16xf32>
    %80 = arith.mulf %79, %78 : vector<16x16xf32>
    %81 = arith.addf %68, %80 : vector<16x16xf32>
    %82 = vector.extract_strided_slice %27 {offsets = [0, 4], sizes = [16, 1], strides = [1, 1]} : vector<16x32xf32> to vector<16x1xf32>
    %83 = vector.extract_strided_slice %28 {offsets = [4, 0], sizes = [1, 16], strides = [1, 1]} : vector<32x16xf32> to vector<1x16xf32>
    %84 = vector.broadcast %82 : vector<16x1xf32> to vector<16x16xf32>
    %85 = vector.broadcast %83 : vector<1x16xf32> to vector<16x16xf32>
    %86 = arith.addf %84, %85 : vector<16x16xf32>
    %87 = arith.index_cast %arg0 : i32 to index
    %c4 = arith.constant 4 : index
    %88 = memref.load %arg5[%87, %c4] : memref<8x32xf32, #tpu.memory_space<smem>>
    %cst_30 = arith.constant 2.000000e-01 : f32
    %89 = vector.broadcast %cst_30 : f32 to vector<16x16xf32>
    %90 = arith.mulf %89, %86 : vector<16x16xf32>
    %91 = arith.maximumf %86, %90 : vector<16x16xf32>
    %92 = vector.broadcast %88 : f32 to vector<16x16xf32>
    %93 = arith.mulf %92, %91 : vector<16x16xf32>
    %94 = arith.addf %81, %93 : vector<16x16xf32>
    %95 = vector.extract_strided_slice %27 {offsets = [0, 5], sizes = [16, 1], strides = [1, 1]} : vector<16x32xf32> to vector<16x1xf32>
    %96 = vector.extract_strided_slice %28 {offsets = [5, 0], sizes = [1, 16], strides = [1, 1]} : vector<32x16xf32> to vector<1x16xf32>
    %97 = vector.broadcast %95 : vector<16x1xf32> to vector<16x16xf32>
    %98 = vector.broadcast %96 : vector<1x16xf32> to vector<16x16xf32>
    %99 = arith.addf %97, %98 : vector<16x16xf32>
    %100 = arith.index_cast %arg0 : i32 to index
    %c5 = arith.constant 5 : index
    %101 = memref.load %arg5[%100, %c5] : memref<8x32xf32, #tpu.memory_space<smem>>
    %cst_31 = arith.constant 2.000000e-01 : f32
    %102 = vector.broadcast %cst_31 : f32 to vector<16x16xf32>
    %103 = arith.mulf %102, %99 : vector<16x16xf32>
    %104 = arith.maximumf %99, %103 : vector<16x16xf32>
    %105 = vector.broadcast %101 : f32 to vector<16x16xf32>
    %106 = arith.mulf %105, %104 : vector<16x16xf32>
    %107 = arith.addf %94, %106 : vector<16x16xf32>
    %108 = vector.extract_strided_slice %27 {offsets = [0, 6], sizes = [16, 1], strides = [1, 1]} : vector<16x32xf32> to vector<16x1xf32>
    %109 = vector.extract_strided_slice %28 {offsets = [6, 0], sizes = [1, 16], strides = [1, 1]} : vector<32x16xf32> to vector<1x16xf32>
    %110 = vector.broadcast %108 : vector<16x1xf32> to vector<16x16xf32>
    %111 = vector.broadcast %109 : vector<1x16xf32> to vector<16x16xf32>
    %112 = arith.addf %110, %111 : vector<16x16xf32>
    %113 = arith.index_cast %arg0 : i32 to index
    %c6 = arith.constant 6 : index
    %114 = memref.load %arg5[%113, %c6] : memref<8x32xf32, #tpu.memory_space<smem>>
    %cst_32 = arith.constant 2.000000e-01 : f32
    %115 = vector.broadcast %cst_32 : f32 to vector<16x16xf32>
    %116 = arith.mulf %115, %112 : vector<16x16xf32>
    %117 = arith.maximumf %112, %116 : vector<16x16xf32>
    %118 = vector.broadcast %114 : f32 to vector<16x16xf32>
    %119 = arith.mulf %118, %117 : vector<16x16xf32>
    %120 = arith.addf %107, %119 : vector<16x16xf32>
    %121 = vector.extract_strided_slice %27 {offsets = [0, 7], sizes = [16, 1], strides = [1, 1]} : vector<16x32xf32> to vector<16x1xf32>
    %122 = vector.extract_strided_slice %28 {offsets = [7, 0], sizes = [1, 16], strides = [1, 1]} : vector<32x16xf32> to vector<1x16xf32>
    %123 = vector.broadcast %121 : vector<16x1xf32> to vector<16x16xf32>
    %124 = vector.broadcast %122 : vector<1x16xf32> to vector<16x16xf32>
    %125 = arith.addf %123, %124 : vector<16x16xf32>
    %126 = arith.index_cast %arg0 : i32 to index
    %c7 = arith.constant 7 : index
    %127 = memref.load %arg5[%126, %c7] : memref<8x32xf32, #tpu.memory_space<smem>>
    %cst_33 = arith.constant 2.000000e-01 : f32
    %128 = vector.broadcast %cst_33 : f32 to vector<16x16xf32>
    %129 = arith.mulf %128, %125 : vector<16x16xf32>
    %130 = arith.maximumf %125, %129 : vector<16x16xf32>
    %131 = vector.broadcast %127 : f32 to vector<16x16xf32>
    %132 = arith.mulf %131, %130 : vector<16x16xf32>
    %133 = arith.addf %120, %132 : vector<16x16xf32>
    %134 = vector.extract_strided_slice %27 {offsets = [0, 8], sizes = [16, 1], strides = [1, 1]} : vector<16x32xf32> to vector<16x1xf32>
    %135 = vector.extract_strided_slice %28 {offsets = [8, 0], sizes = [1, 16], strides = [1, 1]} : vector<32x16xf32> to vector<1x16xf32>
    %136 = vector.broadcast %134 : vector<16x1xf32> to vector<16x16xf32>
    %137 = vector.broadcast %135 : vector<1x16xf32> to vector<16x16xf32>
    %138 = arith.addf %136, %137 : vector<16x16xf32>
    %139 = arith.index_cast %arg0 : i32 to index
    %c8 = arith.constant 8 : index
    %140 = memref.load %arg5[%139, %c8] : memref<8x32xf32, #tpu.memory_space<smem>>
    %cst_34 = arith.constant 2.000000e-01 : f32
    %141 = vector.broadcast %cst_34 : f32 to vector<16x16xf32>
    %142 = arith.mulf %141, %138 : vector<16x16xf32>
    %143 = arith.maximumf %138, %142 : vector<16x16xf32>
    %144 = vector.broadcast %140 : f32 to vector<16x16xf32>
    %145 = arith.mulf %144, %143 : vector<16x16xf32>
    %146 = arith.addf %133, %145 : vector<16x16xf32>
    %147 = vector.extract_strided_slice %27 {offsets = [0, 9], sizes = [16, 1], strides = [1, 1]} : vector<16x32xf32> to vector<16x1xf32>
    %148 = vector.extract_strided_slice %28 {offsets = [9, 0], sizes = [1, 16], strides = [1, 1]} : vector<32x16xf32> to vector<1x16xf32>
    %149 = vector.broadcast %147 : vector<16x1xf32> to vector<16x16xf32>
    %150 = vector.broadcast %148 : vector<1x16xf32> to vector<16x16xf32>
    %151 = arith.addf %149, %150 : vector<16x16xf32>
    %152 = arith.index_cast %arg0 : i32 to index
    %c9 = arith.constant 9 : index
    %153 = memref.load %arg5[%152, %c9] : memref<8x32xf32, #tpu.memory_space<smem>>
    %cst_35 = arith.constant 2.000000e-01 : f32
    %154 = vector.broadcast %cst_35 : f32 to vector<16x16xf32>
    %155 = arith.mulf %154, %151 : vector<16x16xf32>
    %156 = arith.maximumf %151, %155 : vector<16x16xf32>
    %157 = vector.broadcast %153 : f32 to vector<16x16xf32>
    %158 = arith.mulf %157, %156 : vector<16x16xf32>
    %159 = arith.addf %146, %158 : vector<16x16xf32>
    %160 = vector.extract_strided_slice %27 {offsets = [0, 10], sizes = [16, 1], strides = [1, 1]} : vector<16x32xf32> to vector<16x1xf32>
    %161 = vector.extract_strided_slice %28 {offsets = [10, 0], sizes = [1, 16], strides = [1, 1]} : vector<32x16xf32> to vector<1x16xf32>
    %162 = vector.broadcast %160 : vector<16x1xf32> to vector<16x16xf32>
    %163 = vector.broadcast %161 : vector<1x16xf32> to vector<16x16xf32>
    %164 = arith.addf %162, %163 : vector<16x16xf32>
    %165 = arith.index_cast %arg0 : i32 to index
    %c10 = arith.constant 10 : index
    %166 = memref.load %arg5[%165, %c10] : memref<8x32xf32, #tpu.memory_space<smem>>
    %cst_36 = arith.constant 2.000000e-01 : f32
    %167 = vector.broadcast %cst_36 : f32 to vector<16x16xf32>
    %168 = arith.mulf %167, %164 : vector<16x16xf32>
    %169 = arith.maximumf %164, %168 : vector<16x16xf32>
    %170 = vector.broadcast %166 : f32 to vector<16x16xf32>
    %171 = arith.mulf %170, %169 : vector<16x16xf32>
    %172 = arith.addf %159, %171 : vector<16x16xf32>
    %173 = vector.extract_strided_slice %27 {offsets = [0, 11], sizes = [16, 1], strides = [1, 1]} : vector<16x32xf32> to vector<16x1xf32>
    %174 = vector.extract_strided_slice %28 {offsets = [11, 0], sizes = [1, 16], strides = [1, 1]} : vector<32x16xf32> to vector<1x16xf32>
    %175 = vector.broadcast %173 : vector<16x1xf32> to vector<16x16xf32>
    %176 = vector.broadcast %174 : vector<1x16xf32> to vector<16x16xf32>
    %177 = arith.addf %175, %176 : vector<16x16xf32>
    %178 = arith.index_cast %arg0 : i32 to index
    %c11 = arith.constant 11 : index
    %179 = memref.load %arg5[%178, %c11] : memref<8x32xf32, #tpu.memory_space<smem>>
    %cst_37 = arith.constant 2.000000e-01 : f32
    %180 = vector.broadcast %cst_37 : f32 to vector<16x16xf32>
    %181 = arith.mulf %180, %177 : vector<16x16xf32>
    %182 = arith.maximumf %177, %181 : vector<16x16xf32>
    %183 = vector.broadcast %179 : f32 to vector<16x16xf32>
    %184 = arith.mulf %183, %182 : vector<16x16xf32>
    %185 = arith.addf %172, %184 : vector<16x16xf32>
    %186 = vector.extract_strided_slice %27 {offsets = [0, 12], sizes = [16, 1], strides = [1, 1]} : vector<16x32xf32> to vector<16x1xf32>
    %187 = vector.extract_strided_slice %28 {offsets = [12, 0], sizes = [1, 16], strides = [1, 1]} : vector<32x16xf32> to vector<1x16xf32>
    %188 = vector.broadcast %186 : vector<16x1xf32> to vector<16x16xf32>
    %189 = vector.broadcast %187 : vector<1x16xf32> to vector<16x16xf32>
    %190 = arith.addf %188, %189 : vector<16x16xf32>
    %191 = arith.index_cast %arg0 : i32 to index
    %c12 = arith.constant 12 : index
    %192 = memref.load %arg5[%191, %c12] : memref<8x32xf32, #tpu.memory_space<smem>>
    %cst_38 = arith.constant 2.000000e-01 : f32
    %193 = vector.broadcast %cst_38 : f32 to vector<16x16xf32>
    %194 = arith.mulf %193, %190 : vector<16x16xf32>
    %195 = arith.maximumf %190, %194 : vector<16x16xf32>
    %196 = vector.broadcast %192 : f32 to vector<16x16xf32>
    %197 = arith.mulf %196, %195 : vector<16x16xf32>
    %198 = arith.addf %185, %197 : vector<16x16xf32>
    %199 = vector.extract_strided_slice %27 {offsets = [0, 13], sizes = [16, 1], strides = [1, 1]} : vector<16x32xf32> to vector<16x1xf32>
    %200 = vector.extract_strided_slice %28 {offsets = [13, 0], sizes = [1, 16], strides = [1, 1]} : vector<32x16xf32> to vector<1x16xf32>
    %201 = vector.broadcast %199 : vector<16x1xf32> to vector<16x16xf32>
    %202 = vector.broadcast %200 : vector<1x16xf32> to vector<16x16xf32>
    %203 = arith.addf %201, %202 : vector<16x16xf32>
    %204 = arith.index_cast %arg0 : i32 to index
    %c13 = arith.constant 13 : index
    %205 = memref.load %arg5[%204, %c13] : memref<8x32xf32, #tpu.memory_space<smem>>
    %cst_39 = arith.constant 2.000000e-01 : f32
    %206 = vector.broadcast %cst_39 : f32 to vector<16x16xf32>
    %207 = arith.mulf %206, %203 : vector<16x16xf32>
    %208 = arith.maximumf %203, %207 : vector<16x16xf32>
    %209 = vector.broadcast %205 : f32 to vector<16x16xf32>
    %210 = arith.mulf %209, %208 : vector<16x16xf32>
    %211 = arith.addf %198, %210 : vector<16x16xf32>
    %212 = vector.extract_strided_slice %27 {offsets = [0, 14], sizes = [16, 1], strides = [1, 1]} : vector<16x32xf32> to vector<16x1xf32>
    %213 = vector.extract_strided_slice %28 {offsets = [14, 0], sizes = [1, 16], strides = [1, 1]} : vector<32x16xf32> to vector<1x16xf32>
    %214 = vector.broadcast %212 : vector<16x1xf32> to vector<16x16xf32>
    %215 = vector.broadcast %213 : vector<1x16xf32> to vector<16x16xf32>
    %216 = arith.addf %214, %215 : vector<16x16xf32>
    %217 = arith.index_cast %arg0 : i32 to index
    %c14 = arith.constant 14 : index
    %218 = memref.load %arg5[%217, %c14] : memref<8x32xf32, #tpu.memory_space<smem>>
    %cst_40 = arith.constant 2.000000e-01 : f32
    %219 = vector.broadcast %cst_40 : f32 to vector<16x16xf32>
    %220 = arith.mulf %219, %216 : vector<16x16xf32>
    %221 = arith.maximumf %216, %220 : vector<16x16xf32>
    %222 = vector.broadcast %218 : f32 to vector<16x16xf32>
    %223 = arith.mulf %222, %221 : vector<16x16xf32>
    %224 = arith.addf %211, %223 : vector<16x16xf32>
    %225 = vector.extract_strided_slice %27 {offsets = [0, 15], sizes = [16, 1], strides = [1, 1]} : vector<16x32xf32> to vector<16x1xf32>
    %226 = vector.extract_strided_slice %28 {offsets = [15, 0], sizes = [1, 16], strides = [1, 1]} : vector<32x16xf32> to vector<1x16xf32>
    %227 = vector.broadcast %225 : vector<16x1xf32> to vector<16x16xf32>
    %228 = vector.broadcast %226 : vector<1x16xf32> to vector<16x16xf32>
    %229 = arith.addf %227, %228 : vector<16x16xf32>
    %230 = arith.index_cast %arg0 : i32 to index
    %c15 = arith.constant 15 : index
    %231 = memref.load %arg5[%230, %c15] : memref<8x32xf32, #tpu.memory_space<smem>>
    %cst_41 = arith.constant 2.000000e-01 : f32
    %232 = vector.broadcast %cst_41 : f32 to vector<16x16xf32>
    %233 = arith.mulf %232, %229 : vector<16x16xf32>
    %234 = arith.maximumf %229, %233 : vector<16x16xf32>
    %235 = vector.broadcast %231 : f32 to vector<16x16xf32>
    %236 = arith.mulf %235, %234 : vector<16x16xf32>
    %237 = arith.addf %224, %236 : vector<16x16xf32>
    %238 = vector.extract_strided_slice %27 {offsets = [0, 16], sizes = [16, 1], strides = [1, 1]} : vector<16x32xf32> to vector<16x1xf32>
    %239 = vector.extract_strided_slice %28 {offsets = [16, 0], sizes = [1, 16], strides = [1, 1]} : vector<32x16xf32> to vector<1x16xf32>
    %240 = vector.broadcast %238 : vector<16x1xf32> to vector<16x16xf32>
    %241 = vector.broadcast %239 : vector<1x16xf32> to vector<16x16xf32>
    %242 = arith.addf %240, %241 : vector<16x16xf32>
    %243 = arith.index_cast %arg0 : i32 to index
    %c16 = arith.constant 16 : index
    %244 = memref.load %arg5[%243, %c16] : memref<8x32xf32, #tpu.memory_space<smem>>
    %cst_42 = arith.constant 2.000000e-01 : f32
    %245 = vector.broadcast %cst_42 : f32 to vector<16x16xf32>
    %246 = arith.mulf %245, %242 : vector<16x16xf32>
    %247 = arith.maximumf %242, %246 : vector<16x16xf32>
    %248 = vector.broadcast %244 : f32 to vector<16x16xf32>
    %249 = arith.mulf %248, %247 : vector<16x16xf32>
    %250 = arith.addf %237, %249 : vector<16x16xf32>
    %251 = vector.extract_strided_slice %27 {offsets = [0, 17], sizes = [16, 1], strides = [1, 1]} : vector<16x32xf32> to vector<16x1xf32>
    %252 = vector.extract_strided_slice %28 {offsets = [17, 0], sizes = [1, 16], strides = [1, 1]} : vector<32x16xf32> to vector<1x16xf32>
    %253 = vector.broadcast %251 : vector<16x1xf32> to vector<16x16xf32>
    %254 = vector.broadcast %252 : vector<1x16xf32> to vector<16x16xf32>
    %255 = arith.addf %253, %254 : vector<16x16xf32>
    %256 = arith.index_cast %arg0 : i32 to index
    %c17 = arith.constant 17 : index
    %257 = memref.load %arg5[%256, %c17] : memref<8x32xf32, #tpu.memory_space<smem>>
    %cst_43 = arith.constant 2.000000e-01 : f32
    %258 = vector.broadcast %cst_43 : f32 to vector<16x16xf32>
    %259 = arith.mulf %258, %255 : vector<16x16xf32>
    %260 = arith.maximumf %255, %259 : vector<16x16xf32>
    %261 = vector.broadcast %257 : f32 to vector<16x16xf32>
    %262 = arith.mulf %261, %260 : vector<16x16xf32>
    %263 = arith.addf %250, %262 : vector<16x16xf32>
    %264 = vector.extract_strided_slice %27 {offsets = [0, 18], sizes = [16, 1], strides = [1, 1]} : vector<16x32xf32> to vector<16x1xf32>
    %265 = vector.extract_strided_slice %28 {offsets = [18, 0], sizes = [1, 16], strides = [1, 1]} : vector<32x16xf32> to vector<1x16xf32>
    %266 = vector.broadcast %264 : vector<16x1xf32> to vector<16x16xf32>
    %267 = vector.broadcast %265 : vector<1x16xf32> to vector<16x16xf32>
    %268 = arith.addf %266, %267 : vector<16x16xf32>
    %269 = arith.index_cast %arg0 : i32 to index
    %c18 = arith.constant 18 : index
    %270 = memref.load %arg5[%269, %c18] : memref<8x32xf32, #tpu.memory_space<smem>>
    %cst_44 = arith.constant 2.000000e-01 : f32
    %271 = vector.broadcast %cst_44 : f32 to vector<16x16xf32>
    %272 = arith.mulf %271, %268 : vector<16x16xf32>
    %273 = arith.maximumf %268, %272 : vector<16x16xf32>
    %274 = vector.broadcast %270 : f32 to vector<16x16xf32>
    %275 = arith.mulf %274, %273 : vector<16x16xf32>
    %276 = arith.addf %263, %275 : vector<16x16xf32>
    %277 = vector.extract_strided_slice %27 {offsets = [0, 19], sizes = [16, 1], strides = [1, 1]} : vector<16x32xf32> to vector<16x1xf32>
    %278 = vector.extract_strided_slice %28 {offsets = [19, 0], sizes = [1, 16], strides = [1, 1]} : vector<32x16xf32> to vector<1x16xf32>
    %279 = vector.broadcast %277 : vector<16x1xf32> to vector<16x16xf32>
    %280 = vector.broadcast %278 : vector<1x16xf32> to vector<16x16xf32>
    %281 = arith.addf %279, %280 : vector<16x16xf32>
    %282 = arith.index_cast %arg0 : i32 to index
    %c19 = arith.constant 19 : index
    %283 = memref.load %arg5[%282, %c19] : memref<8x32xf32, #tpu.memory_space<smem>>
    %cst_45 = arith.constant 2.000000e-01 : f32
    %284 = vector.broadcast %cst_45 : f32 to vector<16x16xf32>
    %285 = arith.mulf %284, %281 : vector<16x16xf32>
    %286 = arith.maximumf %281, %285 : vector<16x16xf32>
    %287 = vector.broadcast %283 : f32 to vector<16x16xf32>
    %288 = arith.mulf %287, %286 : vector<16x16xf32>
    %289 = arith.addf %276, %288 : vector<16x16xf32>
    %290 = vector.extract_strided_slice %27 {offsets = [0, 20], sizes = [16, 1], strides = [1, 1]} : vector<16x32xf32> to vector<16x1xf32>
    %291 = vector.extract_strided_slice %28 {offsets = [20, 0], sizes = [1, 16], strides = [1, 1]} : vector<32x16xf32> to vector<1x16xf32>
    %292 = vector.broadcast %290 : vector<16x1xf32> to vector<16x16xf32>
    %293 = vector.broadcast %291 : vector<1x16xf32> to vector<16x16xf32>
    %294 = arith.addf %292, %293 : vector<16x16xf32>
    %295 = arith.index_cast %arg0 : i32 to index
    %c20 = arith.constant 20 : index
    %296 = memref.load %arg5[%295, %c20] : memref<8x32xf32, #tpu.memory_space<smem>>
    %cst_46 = arith.constant 2.000000e-01 : f32
    %297 = vector.broadcast %cst_46 : f32 to vector<16x16xf32>
    %298 = arith.mulf %297, %294 : vector<16x16xf32>
    %299 = arith.maximumf %294, %298 : vector<16x16xf32>
    %300 = vector.broadcast %296 : f32 to vector<16x16xf32>
    %301 = arith.mulf %300, %299 : vector<16x16xf32>
    %302 = arith.addf %289, %301 : vector<16x16xf32>
    %303 = vector.extract_strided_slice %27 {offsets = [0, 21], sizes = [16, 1], strides = [1, 1]} : vector<16x32xf32> to vector<16x1xf32>
    %304 = vector.extract_strided_slice %28 {offsets = [21, 0], sizes = [1, 16], strides = [1, 1]} : vector<32x16xf32> to vector<1x16xf32>
    %305 = vector.broadcast %303 : vector<16x1xf32> to vector<16x16xf32>
    %306 = vector.broadcast %304 : vector<1x16xf32> to vector<16x16xf32>
    %307 = arith.addf %305, %306 : vector<16x16xf32>
    %308 = arith.index_cast %arg0 : i32 to index
    %c21 = arith.constant 21 : index
    %309 = memref.load %arg5[%308, %c21] : memref<8x32xf32, #tpu.memory_space<smem>>
    %cst_47 = arith.constant 2.000000e-01 : f32
    %310 = vector.broadcast %cst_47 : f32 to vector<16x16xf32>
    %311 = arith.mulf %310, %307 : vector<16x16xf32>
    %312 = arith.maximumf %307, %311 : vector<16x16xf32>
    %313 = vector.broadcast %309 : f32 to vector<16x16xf32>
    %314 = arith.mulf %313, %312 : vector<16x16xf32>
    %315 = arith.addf %302, %314 : vector<16x16xf32>
    %316 = vector.extract_strided_slice %27 {offsets = [0, 22], sizes = [16, 1], strides = [1, 1]} : vector<16x32xf32> to vector<16x1xf32>
    %317 = vector.extract_strided_slice %28 {offsets = [22, 0], sizes = [1, 16], strides = [1, 1]} : vector<32x16xf32> to vector<1x16xf32>
    %318 = vector.broadcast %316 : vector<16x1xf32> to vector<16x16xf32>
    %319 = vector.broadcast %317 : vector<1x16xf32> to vector<16x16xf32>
    %320 = arith.addf %318, %319 : vector<16x16xf32>
    %321 = arith.index_cast %arg0 : i32 to index
    %c22 = arith.constant 22 : index
    %322 = memref.load %arg5[%321, %c22] : memref<8x32xf32, #tpu.memory_space<smem>>
    %cst_48 = arith.constant 2.000000e-01 : f32
    %323 = vector.broadcast %cst_48 : f32 to vector<16x16xf32>
    %324 = arith.mulf %323, %320 : vector<16x16xf32>
    %325 = arith.maximumf %320, %324 : vector<16x16xf32>
    %326 = vector.broadcast %322 : f32 to vector<16x16xf32>
    %327 = arith.mulf %326, %325 : vector<16x16xf32>
    %328 = arith.addf %315, %327 : vector<16x16xf32>
    %329 = vector.extract_strided_slice %27 {offsets = [0, 23], sizes = [16, 1], strides = [1, 1]} : vector<16x32xf32> to vector<16x1xf32>
    %330 = vector.extract_strided_slice %28 {offsets = [23, 0], sizes = [1, 16], strides = [1, 1]} : vector<32x16xf32> to vector<1x16xf32>
    %331 = vector.broadcast %329 : vector<16x1xf32> to vector<16x16xf32>
    %332 = vector.broadcast %330 : vector<1x16xf32> to vector<16x16xf32>
    %333 = arith.addf %331, %332 : vector<16x16xf32>
    %334 = arith.index_cast %arg0 : i32 to index
    %c23 = arith.constant 23 : index
    %335 = memref.load %arg5[%334, %c23] : memref<8x32xf32, #tpu.memory_space<smem>>
    %cst_49 = arith.constant 2.000000e-01 : f32
    %336 = vector.broadcast %cst_49 : f32 to vector<16x16xf32>
    %337 = arith.mulf %336, %333 : vector<16x16xf32>
    %338 = arith.maximumf %333, %337 : vector<16x16xf32>
    %339 = vector.broadcast %335 : f32 to vector<16x16xf32>
    %340 = arith.mulf %339, %338 : vector<16x16xf32>
    %341 = arith.addf %328, %340 : vector<16x16xf32>
    %342 = vector.extract_strided_slice %27 {offsets = [0, 24], sizes = [16, 1], strides = [1, 1]} : vector<16x32xf32> to vector<16x1xf32>
    %343 = vector.extract_strided_slice %28 {offsets = [24, 0], sizes = [1, 16], strides = [1, 1]} : vector<32x16xf32> to vector<1x16xf32>
    %344 = vector.broadcast %342 : vector<16x1xf32> to vector<16x16xf32>
    %345 = vector.broadcast %343 : vector<1x16xf32> to vector<16x16xf32>
    %346 = arith.addf %344, %345 : vector<16x16xf32>
    %347 = arith.index_cast %arg0 : i32 to index
    %c24 = arith.constant 24 : index
    %348 = memref.load %arg5[%347, %c24] : memref<8x32xf32, #tpu.memory_space<smem>>
    %cst_50 = arith.constant 2.000000e-01 : f32
    %349 = vector.broadcast %cst_50 : f32 to vector<16x16xf32>
    %350 = arith.mulf %349, %346 : vector<16x16xf32>
    %351 = arith.maximumf %346, %350 : vector<16x16xf32>
    %352 = vector.broadcast %348 : f32 to vector<16x16xf32>
    %353 = arith.mulf %352, %351 : vector<16x16xf32>
    %354 = arith.addf %341, %353 : vector<16x16xf32>
    %355 = vector.extract_strided_slice %27 {offsets = [0, 25], sizes = [16, 1], strides = [1, 1]} : vector<16x32xf32> to vector<16x1xf32>
    %356 = vector.extract_strided_slice %28 {offsets = [25, 0], sizes = [1, 16], strides = [1, 1]} : vector<32x16xf32> to vector<1x16xf32>
    %357 = vector.broadcast %355 : vector<16x1xf32> to vector<16x16xf32>
    %358 = vector.broadcast %356 : vector<1x16xf32> to vector<16x16xf32>
    %359 = arith.addf %357, %358 : vector<16x16xf32>
    %360 = arith.index_cast %arg0 : i32 to index
    %c25 = arith.constant 25 : index
    %361 = memref.load %arg5[%360, %c25] : memref<8x32xf32, #tpu.memory_space<smem>>
    %cst_51 = arith.constant 2.000000e-01 : f32
    %362 = vector.broadcast %cst_51 : f32 to vector<16x16xf32>
    %363 = arith.mulf %362, %359 : vector<16x16xf32>
    %364 = arith.maximumf %359, %363 : vector<16x16xf32>
    %365 = vector.broadcast %361 : f32 to vector<16x16xf32>
    %366 = arith.mulf %365, %364 : vector<16x16xf32>
    %367 = arith.addf %354, %366 : vector<16x16xf32>
    %368 = vector.extract_strided_slice %27 {offsets = [0, 26], sizes = [16, 1], strides = [1, 1]} : vector<16x32xf32> to vector<16x1xf32>
    %369 = vector.extract_strided_slice %28 {offsets = [26, 0], sizes = [1, 16], strides = [1, 1]} : vector<32x16xf32> to vector<1x16xf32>
    %370 = vector.broadcast %368 : vector<16x1xf32> to vector<16x16xf32>
    %371 = vector.broadcast %369 : vector<1x16xf32> to vector<16x16xf32>
    %372 = arith.addf %370, %371 : vector<16x16xf32>
    %373 = arith.index_cast %arg0 : i32 to index
    %c26 = arith.constant 26 : index
    %374 = memref.load %arg5[%373, %c26] : memref<8x32xf32, #tpu.memory_space<smem>>
    %cst_52 = arith.constant 2.000000e-01 : f32
    %375 = vector.broadcast %cst_52 : f32 to vector<16x16xf32>
    %376 = arith.mulf %375, %372 : vector<16x16xf32>
    %377 = arith.maximumf %372, %376 : vector<16x16xf32>
    %378 = vector.broadcast %374 : f32 to vector<16x16xf32>
    %379 = arith.mulf %378, %377 : vector<16x16xf32>
    %380 = arith.addf %367, %379 : vector<16x16xf32>
    %381 = vector.extract_strided_slice %27 {offsets = [0, 27], sizes = [16, 1], strides = [1, 1]} : vector<16x32xf32> to vector<16x1xf32>
    %382 = vector.extract_strided_slice %28 {offsets = [27, 0], sizes = [1, 16], strides = [1, 1]} : vector<32x16xf32> to vector<1x16xf32>
    %383 = vector.broadcast %381 : vector<16x1xf32> to vector<16x16xf32>
    %384 = vector.broadcast %382 : vector<1x16xf32> to vector<16x16xf32>
    %385 = arith.addf %383, %384 : vector<16x16xf32>
    %386 = arith.index_cast %arg0 : i32 to index
    %c27 = arith.constant 27 : index
    %387 = memref.load %arg5[%386, %c27] : memref<8x32xf32, #tpu.memory_space<smem>>
    %cst_53 = arith.constant 2.000000e-01 : f32
    %388 = vector.broadcast %cst_53 : f32 to vector<16x16xf32>
    %389 = arith.mulf %388, %385 : vector<16x16xf32>
    %390 = arith.maximumf %385, %389 : vector<16x16xf32>
    %391 = vector.broadcast %387 : f32 to vector<16x16xf32>
    %392 = arith.mulf %391, %390 : vector<16x16xf32>
    %393 = arith.addf %380, %392 : vector<16x16xf32>
    %394 = vector.extract_strided_slice %27 {offsets = [0, 28], sizes = [16, 1], strides = [1, 1]} : vector<16x32xf32> to vector<16x1xf32>
    %395 = vector.extract_strided_slice %28 {offsets = [28, 0], sizes = [1, 16], strides = [1, 1]} : vector<32x16xf32> to vector<1x16xf32>
    %396 = vector.broadcast %394 : vector<16x1xf32> to vector<16x16xf32>
    %397 = vector.broadcast %395 : vector<1x16xf32> to vector<16x16xf32>
    %398 = arith.addf %396, %397 : vector<16x16xf32>
    %399 = arith.index_cast %arg0 : i32 to index
    %c28 = arith.constant 28 : index
    %400 = memref.load %arg5[%399, %c28] : memref<8x32xf32, #tpu.memory_space<smem>>
    %cst_54 = arith.constant 2.000000e-01 : f32
    %401 = vector.broadcast %cst_54 : f32 to vector<16x16xf32>
    %402 = arith.mulf %401, %398 : vector<16x16xf32>
    %403 = arith.maximumf %398, %402 : vector<16x16xf32>
    %404 = vector.broadcast %400 : f32 to vector<16x16xf32>
    %405 = arith.mulf %404, %403 : vector<16x16xf32>
    %406 = arith.addf %393, %405 : vector<16x16xf32>
    %407 = vector.extract_strided_slice %27 {offsets = [0, 29], sizes = [16, 1], strides = [1, 1]} : vector<16x32xf32> to vector<16x1xf32>
    %408 = vector.extract_strided_slice %28 {offsets = [29, 0], sizes = [1, 16], strides = [1, 1]} : vector<32x16xf32> to vector<1x16xf32>
    %409 = vector.broadcast %407 : vector<16x1xf32> to vector<16x16xf32>
    %410 = vector.broadcast %408 : vector<1x16xf32> to vector<16x16xf32>
    %411 = arith.addf %409, %410 : vector<16x16xf32>
    %412 = arith.index_cast %arg0 : i32 to index
    %c29 = arith.constant 29 : index
    %413 = memref.load %arg5[%412, %c29] : memref<8x32xf32, #tpu.memory_space<smem>>
    %cst_55 = arith.constant 2.000000e-01 : f32
    %414 = vector.broadcast %cst_55 : f32 to vector<16x16xf32>
    %415 = arith.mulf %414, %411 : vector<16x16xf32>
    %416 = arith.maximumf %411, %415 : vector<16x16xf32>
    %417 = vector.broadcast %413 : f32 to vector<16x16xf32>
    %418 = arith.mulf %417, %416 : vector<16x16xf32>
    %419 = arith.addf %406, %418 : vector<16x16xf32>
    %420 = vector.extract_strided_slice %27 {offsets = [0, 30], sizes = [16, 1], strides = [1, 1]} : vector<16x32xf32> to vector<16x1xf32>
    %421 = vector.extract_strided_slice %28 {offsets = [30, 0], sizes = [1, 16], strides = [1, 1]} : vector<32x16xf32> to vector<1x16xf32>
    %422 = vector.broadcast %420 : vector<16x1xf32> to vector<16x16xf32>
    %423 = vector.broadcast %421 : vector<1x16xf32> to vector<16x16xf32>
    %424 = arith.addf %422, %423 : vector<16x16xf32>
    %425 = arith.index_cast %arg0 : i32 to index
    %c30 = arith.constant 30 : index
    %426 = memref.load %arg5[%425, %c30] : memref<8x32xf32, #tpu.memory_space<smem>>
    %cst_56 = arith.constant 2.000000e-01 : f32
    %427 = vector.broadcast %cst_56 : f32 to vector<16x16xf32>
    %428 = arith.mulf %427, %424 : vector<16x16xf32>
    %429 = arith.maximumf %424, %428 : vector<16x16xf32>
    %430 = vector.broadcast %426 : f32 to vector<16x16xf32>
    %431 = arith.mulf %430, %429 : vector<16x16xf32>
    %432 = arith.addf %419, %431 : vector<16x16xf32>
    %433 = vector.extract_strided_slice %27 {offsets = [0, 31], sizes = [16, 1], strides = [1, 1]} : vector<16x32xf32> to vector<16x1xf32>
    %434 = vector.extract_strided_slice %28 {offsets = [31, 0], sizes = [1, 16], strides = [1, 1]} : vector<32x16xf32> to vector<1x16xf32>
    %435 = vector.broadcast %433 : vector<16x1xf32> to vector<16x16xf32>
    %436 = vector.broadcast %434 : vector<1x16xf32> to vector<16x16xf32>
    %437 = arith.addf %435, %436 : vector<16x16xf32>
    %438 = arith.index_cast %arg0 : i32 to index
    %c31 = arith.constant 31 : index
    %439 = memref.load %arg5[%438, %c31] : memref<8x32xf32, #tpu.memory_space<smem>>
    %cst_57 = arith.constant 2.000000e-01 : f32
    %440 = vector.broadcast %cst_57 : f32 to vector<16x16xf32>
    %441 = arith.mulf %440, %437 : vector<16x16xf32>
    %442 = arith.maximumf %437, %441 : vector<16x16xf32>
    %443 = vector.broadcast %439 : f32 to vector<16x16xf32>
    %444 = arith.mulf %443, %442 : vector<16x16xf32>
    %445 = arith.addf %432, %444 : vector<16x16xf32>
    %cst_58 = arith.constant 0.000000e+00 : f32
    %446 = vector.broadcast %cst_58 : f32 to vector<16x16xf32>
    %447 = arith.cmpf ogt, %11, %446 : vector<16x16xf32>
    %cst_59 = arith.constant -1.000000e+30 : f32
    %448 = vector.broadcast %cst_59 : f32 to vector<16x16xf32>
    %449 = arith.select %447, %445, %448 : vector<16x16xi1>, vector<16x16xf32>
    %cst_60 = arith.constant dense<0xFF800000> : vector<16xf32>
    %450 = vector.multi_reduction <maximumf>, %449, %cst_60 [1] : vector<16x16xf32> to vector<16xf32>
    %451 = vector.shape_cast %450 : vector<16xf32> to vector<16x1xf32>
    %452 = vector.broadcast %451 : vector<16x1xf32> to vector<16x16xf32>
    %453 = arith.subf %449, %452 : vector<16x16xf32>
    %454 = math.exp %453 : vector<16x16xf32>
    %455 = arith.mulf %454, %11 : vector<16x16xf32>
    %cst_61 = arith.constant dense<0.000000e+00> : vector<16xf32>
    %456 = vector.multi_reduction <add>, %455, %cst_61 [1] : vector<16x16xf32> to vector<16xf32>
    %457 = vector.shape_cast %456 : vector<16xf32> to vector<16x1xf32>
    %cst_62 = arith.constant 1.000000e-30 : f32
    %458 = vector.broadcast %cst_62 : f32 to vector<16x1xf32>
    %459 = arith.maximumf %457, %458 : vector<16x1xf32>
    %460 = tpu.reciprocal %459 {approx = true} : vector<16x1xf32> -> vector<16x1xf32>
    %461 = vector.broadcast %460 : vector<16x1xf32> to vector<16x16xf32>
    %462 = arith.mulf %455, %461 : vector<16x16xf32>
    %c0_63 = arith.constant 0 : index
    %c0_64 = arith.constant 0 : index
    %463 = vector.load %arg13[%c0_63, %c0_64] : memref<16x32xf32, #tpu.memory_space<vmem>>, vector<16x32xf32>
    %464 = arith.truncf %462 : vector<16x16xf32> to vector<16x16xbf16>
    %465 = arith.truncf %22 : vector<16x32xf32> to vector<16x32xbf16>
    %cst_65 = arith.constant dense<0.000000e+00> : vector<16x32xf32>
    %466 = tpu.matmul %464, %465, %cst_65 {dimension_numbers = #tpu.dot_dimension_numbers<[1], [0], [0], [1], [0, 0, 1, 1], [], []>} : vector<16x16xbf16>, vector<16x32xbf16>, vector<16x32xf32> -> vector<16x32xf32>
    %467 = vector.broadcast %17 : vector<1x32xf32> to vector<16x32xf32>
    %468 = arith.addf %466, %467 : vector<16x32xf32>
    %469 = arith.addf %463, %468 : vector<16x32xf32>
    %c0_66 = arith.constant 0 : index
    %c0_67 = arith.constant 0 : index
    %470 = vector.load %arg13[%c0_66, %c0_67] : memref<16x32xf32, #tpu.memory_space<vmem>>, vector<16x32xf32>
    tpu.vector_store %arg13[%c0_66, %c0_67], %469 {strides = array<i32>} : memref<16x32xf32, #tpu.memory_space<vmem>>, vector<16x32xf32>,
    %471 = arith.index_cast %arg0 : i32 to index
    %472 = memref.load %arg4[%471] : memref<8xi32, #tpu.memory_space<smem>>
    %c1_i32_68 = arith.constant 1 : i32
    %473 = arith.cmpi eq, %472, %c1_i32_68 : i32
    %474 = arith.extui %473 : i1 to i32
    %c0_i32_69 = arith.constant 0 : i32
    %475 = arith.cmpi ne, %474, %c0_i32_69 : i32
    scf.if %475 {
      %c0_70 = arith.constant 0 : index
      %c0_71 = arith.constant 0 : index
      %476 = vector.load %arg13[%c0_70, %c0_71] : memref<16x32xf32, #tpu.memory_space<vmem>>, vector<16x32xf32>
      %cst_72 = arith.constant 0.000000e+00 : f32
      %477 = vector.broadcast %cst_72 : f32 to vector<16x32xf32>
      %478 = arith.maximumf %476, %477 : vector<16x32xf32>
      %479 = arith.truncf %478 : vector<16x32xf32> to vector<16x32xbf16>
      %c0_73 = arith.constant 0 : index
      %c0_74 = arith.constant 0 : index
      %c0_75 = arith.constant 0 : index
      %480 = vector.load %arg12[%c0_73, %c0_74, %c0_75] : memref<1x16x32xbf16, #tpu.memory_space<vmem>>, vector<1x16x32xbf16>
      %481 = vector.shape_cast %480 : vector<1x16x32xbf16> to vector<16x32xbf16>
      %482 = vector.shape_cast %479 : vector<16x32xbf16> to vector<1x16x32xbf16>
      tpu.vector_store %arg12[%c0_73, %c0_74, %c0_75], %482 {strides = array<i32>} : memref<1x16x32xbf16, #tpu.memory_space<vmem>>, vector<1x16x32xbf16>,
    } else {
    }
    return
  }
  func.func @transform_0(%arg0: i32, %arg1: memref<8xi32, #tpu.memory_space<smem>>, %arg2: memref<8xi32, #tpu.memory_space<smem>>, %arg3: memref<8xi32, #tpu.memory_space<smem>>, %arg4: memref<8xi32, #tpu.memory_space<smem>>) -> (i32, i32) {
    %c0_i32 = arith.constant 0 : i32
    %c0_i32_0 = arith.constant 0 : i32
    %c0_i32_1 = arith.constant 0 : i32
    return %c0_i32, %c0_i32_0 : i32, i32
  }
  func.func @transform_1(%arg0: i32, %arg1: memref<8xi32, #tpu.memory_space<smem>>, %arg2: memref<8xi32, #tpu.memory_space<smem>>, %arg3: memref<8xi32, #tpu.memory_space<smem>>, %arg4: memref<8xi32, #tpu.memory_space<smem>>) -> (i32, i32, i32) {
    %0 = arith.index_cast %arg0 : i32 to index
    %1 = memref.load %arg2[%0] : memref<8xi32, #tpu.memory_space<smem>>
    %c0_i32 = arith.constant 0 : i32
    %c0_i32_0 = arith.constant 0 : i32
    %c0_i32_1 = arith.constant 0 : i32
    return %1, %c0_i32, %c0_i32_0 : i32, i32, i32
  }
  func.func @transform_2(%arg0: i32, %arg1: memref<8xi32, #tpu.memory_space<smem>>, %arg2: memref<8xi32, #tpu.memory_space<smem>>, %arg3: memref<8xi32, #tpu.memory_space<smem>>, %arg4: memref<8xi32, #tpu.memory_space<smem>>) -> (i32, i32, i32) {
    %0 = arith.index_cast %arg0 : i32 to index
    %1 = memref.load %arg1[%0] : memref<8xi32, #tpu.memory_space<smem>>
    %c0_i32 = arith.constant 0 : i32
    %c0_i32_0 = arith.constant 0 : i32
    %c0_i32_1 = arith.constant 0 : i32
    return %1, %c0_i32, %c0_i32_0 : i32, i32, i32
  }
  func.func @transform_3(%arg0: i32, %arg1: memref<8xi32, #tpu.memory_space<smem>>, %arg2: memref<8xi32, #tpu.memory_space<smem>>, %arg3: memref<8xi32, #tpu.memory_space<smem>>, %arg4: memref<8xi32, #tpu.memory_space<smem>>) -> (i32, i32, i32) {
    %c0_i32 = arith.constant 0 : i32
    %c0_i32_0 = arith.constant 0 : i32
    %c0_i32_1 = arith.constant 0 : i32
    return %arg0, %c0_i32, %c0_i32_0 : i32, i32, i32
  }
  func.func @transform_4(%arg0: i32, %arg1: memref<8xi32, #tpu.memory_space<smem>>, %arg2: memref<8xi32, #tpu.memory_space<smem>>, %arg3: memref<8xi32, #tpu.memory_space<smem>>, %arg4: memref<8xi32, #tpu.memory_space<smem>>) -> (i32, i32, i32) {
    %c0_i32 = arith.constant 0 : i32
    %c0_i32_0 = arith.constant 0 : i32
    %c0_i32_1 = arith.constant 0 : i32
    return %arg0, %c0_i32, %c0_i32_0 : i32, i32, i32
  }
  func.func @transform_5(%arg0: i32, %arg1: memref<8xi32, #tpu.memory_space<smem>>, %arg2: memref<8xi32, #tpu.memory_space<smem>>, %arg3: memref<8xi32, #tpu.memory_space<smem>>, %arg4: memref<8xi32, #tpu.memory_space<smem>>) -> (i32, i32, i32) {
    %c0_i32 = arith.constant 0 : i32
    %c0_i32_0 = arith.constant 0 : i32
    %c0_i32_1 = arith.constant 0 : i32
    return %arg0, %c0_i32, %c0_i32_0 : i32, i32, i32
  }
  func.func @transform_6(%arg0: i32, %arg1: memref<8xi32, #tpu.memory_space<smem>>, %arg2: memref<8xi32, #tpu.memory_space<smem>>, %arg3: memref<8xi32, #tpu.memory_space<smem>>, %arg4: memref<8xi32, #tpu.memory_space<smem>>) -> (i32, i32, i32) {
    %c0_i32 = arith.constant 0 : i32
    %c0_i32_0 = arith.constant 0 : i32
    %c0_i32_1 = arith.constant 0 : i32
    return %arg0, %c0_i32, %c0_i32_0 : i32, i32, i32
  }
  func.func @transform_7(%arg0: i32, %arg1: memref<8xi32, #tpu.memory_space<smem>>, %arg2: memref<8xi32, #tpu.memory_space<smem>>, %arg3: memref<8xi32, #tpu.memory_space<smem>>, %arg4: memref<8xi32, #tpu.memory_space<smem>>) -> (i32, i32, i32) {
    %0 = arith.index_cast %arg0 : i32 to index
    %1 = memref.load %arg1[%0] : memref<8xi32, #tpu.memory_space<smem>>
    %c0_i32 = arith.constant 0 : i32
    %c0_i32_0 = arith.constant 0 : i32
    %c0_i32_1 = arith.constant 0 : i32
    return %1, %c0_i32, %c0_i32_0 : i32, i32, i32
  }
}

</mosaic_0001>

<llo_original>
// kernel: tpu_custom_call.1
$region0: #{tpu_custom_call.1}
  #allocation0 [shape = 'u32[]', space=smem, size = 0x4, offset = 0x4, fixed_abs, tag = 'smem constant byte address 0x4 - core index']
  #allocation1 [shape = 'u32[144,128]{1,0:T(1,128)}', space=vmem, size = 0x12000, scoped, tag = 'internal scratch']
  #allocation2 [shape = 'f32[16,32]{1,0:T(8,128)}', space=vmem, size = 0x2000, scoped, tag = 'scratch operand']
  #allocation3 [shape = 's32[1]{0}', space=sflag, size = 0x4, scoped, tag = 'scoped memory for tpu_custom_call.1']
  #allocation4 [shape = 'u8[512]{0}', space=smem, size = 0x200, scoped, tag = 'prefetched SMEM operand 0']
  #allocation5 [shape = 'u8[512]{0}', space=smem, size = 0x200, scoped, tag = 'prefetched SMEM operand 1']
  #allocation6 [shape = 'u8[512]{0}', space=smem, size = 0x200, scoped, tag = 'prefetched SMEM operand 2']
  #allocation7 [shape = 'u8[512]{0}', space=smem, size = 0x200, scoped, tag = 'prefetched SMEM operand 3']
  %s0 = inlined_call_operand.hbm [shape: s32[8], index: 0, kind: input, shape index: {}]
  %s1 = inlined_call_operand.vmem [shape: s32[8], index: 1, kind: input, shape index: {}]
  %s2 = inlined_call_operand.vmem [shape: s32[8], index: 2, kind: input, shape index: {}]
  %s3 = inlined_call_operand.vmem [shape: s32[8], index: 3, kind: input, shape index: {}]
  %s4 = inlined_call_operand.vmem [shape: f32[8,32], index: 4, kind: input, shape index: {}]
  %s5 = inlined_call_operand.hbm [shape: bf16[4,16,16], index: 5, kind: input, shape index: {}]
  %s6 = inlined_call_operand.hbm [shape: bf16[4,16,16], index: 6, kind: input, shape index: {}]
  %s7 = inlined_call_operand.hbm [shape: bf16[8,16,16], index: 7, kind: input, shape index: {}]
  %s8 = inlined_call_operand.hbm [shape: bf16[8,16,32], index: 8, kind: input, shape index: {}]
  %s9 = inlined_call_operand.hbm [shape: bf16[8,16,32], index: 9, kind: input, shape index: {}]
  %s10 = inlined_call_operand.hbm [shape: f32[8,8,32], index: 10, kind: input, shape index: {}]
  %s11 = inlined_call_operand.hbm [shape: bf16[4,16,32], index: 11, kind: output, shape index: {}]
  %s12 = sld [smem:[#allocation0]]
  $region97: #{tpu_custom_call.1} parent=0
    _
  %s14 = ssub.s32 1, %s12
  %s15 = scalar_select 0, %s14, %s12
  %17 = dma.hbm_to_smem %s0, 16, [#allocation4], [#allocation3]
  %s18 = sshll.u32 %s1, 4
  %s19 = int_to_ptr.vmem [resolvable:$true] %s18
  %21 = dma.vmem_to_smem %s19, 16, [#allocation5], [#allocation3]
  %s22 = sshll.u32 %s2, 4
  %s23 = int_to_ptr.vmem [resolvable:$true] %s22
  %25 = dma.vmem_to_smem %s23, 16, [#allocation6], [#allocation3]
  %s26 = sshll.u32 %s3, 4
  %s27 = int_to_ptr.vmem [resolvable:$true] %s26
  %29 = dma.vmem_to_smem %s27, 16, [#allocation7], [#allocation3]
  %30 = dma.done [#allocation3], 64
  %31 = sfence
  $region1: #{tpu_custom_call.1} parent=0
    #allocation8 [shape = 'u8[4096]{0}', space=smem, size = 0x1000, scoped, tag = 'input window, operand 4, single buffered']
    #allocation9 [shape = 's32[2]{0}', space=sflag, size = 0x8, scoped, tag = 'scoped memory for tpu_custom_call.1']
    #allocation10 [shape = 's32[2]{0}', space=sflag, size = 0x8, scoped, tag = 'scoped memory for tpu_custom_call.1']
    #allocation11 [shape = 's32[2]{0}', space=sflag, size = 0x8, scoped, tag = 'scoped memory for tpu_custom_call.1']
    #allocation12 [shape = 'u8[8192]{0}', space=vmem, size = 0x2000, scoped, tag = 'input window, operand 5']
    #allocation13 [shape = 'u8[8192]{0}', space=vmem, size = 0x2000, scoped, tag = 'input window, operand 6']
    #allocation14 [shape = 's32[2]{0}', space=sflag, size = 0x8, scoped, tag = 'scoped memory for tpu_custom_call.1']
    #allocation15 [shape = 'u8[8192]{0}', space=vmem, size = 0x2000, scoped, tag = 'input window, operand 7']
    #allocation16 [shape = 'u8[8192]{0}', space=vmem, size = 0x2000, scoped, tag = 'input window, operand 8']
    #allocation17 [shape = 's32[2]{0}', space=sflag, size = 0x8, scoped, tag = 'scoped memory for tpu_custom_call.1']
    #allocation18 [shape = 'u8[8192]{0}', space=vmem, size = 0x2000, scoped, tag = 'input window, operand 9']
    #allocation19 [shape = 'u8[8192]{0}', space=vmem, size = 0x2000, scoped, tag = 'input window, operand 10']
    #allocation20 [shape = 's32[2]{0}', space=sflag, size = 0x8, scoped, tag = 'scoped memory for tpu_custom_call.1']
    #allocation21 [shape = 'u8[8192]{0}', space=vmem, size = 0x2000, scoped, tag = 'output window, operand 0']
    %32 = vsyncpa [#allocation11], 0
    %33 = vsyncpa [#allocation9], 0
    %s34 = scalar_lea.sflag [#allocation9], 1
    %35 = vsyncpa %s34, 0
    %36 = vsyncpa [#allocation14], 0
    %s37 = scalar_lea.sflag [#allocation14], 1
    %38 = vsyncpa %s37, 0
    %39 = vsyncpa [#allocation17], 0
    %s40 = scalar_lea.sflag [#allocation17], 1
    %41 = vsyncpa %s40, 0
    %42 = vsyncpa [#allocation20], 0
    %s43 = scalar_lea.sflag [#allocation20], 1
    %44 = vsyncpa %s43, 0
    %45 = vsyncpa [#allocation10], 0
    %s46 = scalar_lea.sflag [#allocation10], 1
    %47 = vsyncpa %s46, 0
    loop: start=0, step=1, limit=10
    $region2: #{tpu_custom_call.1} parent=1 // loop_pre_header
      _
    $region3: #{tpu_custom_call.1} parent=1 // loop_header
      %s49 = sphi 0, %s53
      %p50 = scmp.ge.s32.totalorder %s49, 10
      %s57 = sphi 0, %s57
      %s59 = sphi 0, %s57
      %s60 = sphi 0, %s59
      %s74 = sphi 0, %s60
      %s82 = sphi 0, %s84
      %s85 = sphi 0, %s82
      %s86 = sphi 0, %s85
      %s102 = sphi 0, %s86
      %s110 = sphi 0, %s112
      %s113 = sphi 0, %s110
      %s114 = sphi 0, %s113
      %s130 = sphi 0, %s114
      %s136 = sphi 0, %s138
      %s139 = sphi 0, %s136
      %s140 = sphi 0, %s139
      %s156 = sphi 0, %s140
      %s162 = sphi 0, %s164
      %s165 = sphi 0, %s162
      %s166 = sphi 0, %s165
      %s182 = sphi 0, %s166
      %s188 = sphi 0, %s190
      %s191 = sphi 0, %s188
      %s192 = sphi 0, %s191
      %s208 = sphi 0, %s192
      %s214 = sphi 0, %s216
      %s217 = sphi 0, %s214
      %s218 = sphi 0, %s217
      %s234 = sphi 0, %s218
      %s242 = sphi 0, %s244
      %s245 = sphi 0, %s242
      %s246 = sphi 0, %s245
      %s262 = sphi 0, %s246
    $region4: #{tpu_custom_call.1} parent=1 // loop_header_branch
      %52 = sbr.rel (%p50) target = $region8
    $region5: #{tpu_custom_call.1} parent=1 // loop_body
      %s54 = ssub.s32 %s49, 1
      %s55 = ssub.s32 %s49, 2
      %s56 = sadd.s32 %s49, 1
      %s58 = sadd.s32 %s57, 1
      %p61 = scmp.eq.s32.totalorder %s49, 7
      %p62 = scmp.ne.s32.totalorder %s57, %s59
      %p63 = scmp.eq.s32.totalorder %s49, 0
      %p64 = por %p62, %p63
      %p65 = scmp.ne.s32.totalorder %s57, %s59
      %p66 = scmp.eq.s32.totalorder %s54, 7
      %p67 = por %p65, %p66
      %p68 = scmp.ne.s32.totalorder %s59, %s60
      %p69 = scmp.eq.s32.totalorder %s54, 0
      %p70 = por %p68, %p69
      %p71 = scmp.ne.s32.totalorder %s59, %s60
      %p72 = scmp.eq.s32.totalorder %s55, 7
      %p73 = por %p71, %p72
      %p75 = scmp.ne.s32.totalorder %s60, %s74
      %p76 = scmp.eq.s32.totalorder %s55, 0
      %p77 = por %p75, %p76
      %s78 = sld [smem:[#allocation5 + %s49]]
      %s79 = sld [smem:[#allocation5 + %s56]]
      %s80 = ssub.s32 %s78, %s79
      %p81 = scmp.eq.s32.totalorder %s80, 0
      %s83 = sadd.s32 %s82, 1
      %s84 = scalar_select %p81, %s82, %s83
      %p87 = pneg %p81
      %p88 = scmp.eq.s32.totalorder %s49, 7
      %p89 = por %p87, %p88
      %p90 = scmp.ne.s32.totalorder %s82, %s85
      %p91 = scmp.eq.s32.totalorder %s49, 0
      %p92 = por %p90, %p91
      %p93 = scmp.ne.s32.totalorder %s82, %s85
      %p94 = scmp.eq.s32.totalorder %s54, 7
      %p95 = por %p93, %p94
      %p96 = scmp.ne.s32.totalorder %s85, %s86
      %p97 = scmp.eq.s32.totalorder %s54, 0
      %p98 = por %p96, %p97
      %p99 = scmp.ne.s32.totalorder %s85, %s86
      %p100 = scmp.eq.s32.totalorder %s55, 7
      %p101 = por %p99, %p100
      %p103 = scmp.ne.s32.totalorder %s86, %s102
      %p104 = scmp.eq.s32.totalorder %s55, 0
      %p105 = por %p103, %p104
      %s106 = sld [smem:[#allocation4 + %s49]]
      %s107 = sld [smem:[#allocation4 + %s56]]
      %s108 = ssub.s32 %s106, %s107
      %p109 = scmp.eq.s32.totalorder %s108, 0
      %s111 = sadd.s32 %s110, 1
      %s112 = scalar_select %p109, %s110, %s111
      %p115 = pneg %p109
      %p116 = scmp.eq.s32.totalorder %s49, 7
      %p117 = por %p115, %p116
      %p118 = scmp.ne.s32.totalorder %s110, %s113
      %p119 = scmp.eq.s32.totalorder %s49, 0
      %p120 = por %p118, %p119
      %p121 = scmp.ne.s32.totalorder %s110, %s113
      %p122 = scmp.eq.s32.totalorder %s54, 7
      %p123 = por %p121, %p122
      %p124 = scmp.ne.s32.totalorder %s113, %s114
      %p125 = scmp.eq.s32.totalorder %s54, 0
      %p126 = por %p124, %p125
      %p127 = scmp.ne.s32.totalorder %s113, %s114
      %p128 = scmp.eq.s32.totalorder %s55, 7
      %p129 = por %p127, %p128
      %p131 = scmp.ne.s32.totalorder %s114, %s130
      %p132 = scmp.eq.s32.totalorder %s55, 0
      %p133 = por %p131, %p132
      %s134 = ssub.s32 %s49, %s56
      %p135 = scmp.eq.s32.totalorder %s134, 0
      %s137 = sadd.s32 %s136, 1
      %s138 = scalar_select %p135, %s136, %s137
      %p141 = pneg %p135
      %p142 = scmp.eq.s32.totalorder %s49, 7
      %p143 = por %p141, %p142
      %p144 = scmp.ne.s32.totalorder %s136, %s139
      %p145 = scmp.eq.s32.totalorder %s49, 0
      %p146 = por %p144, %p145
      %p147 = scmp.ne.s32.totalorder %s136, %s139
      %p148 = scmp.eq.s32.totalorder %s54, 7
      %p149 = por %p147, %p148
      %p150 = scmp.ne.s32.totalorder %s139, %s140
      %p151 = scmp.eq.s32.totalorder %s54, 0
      %p152 = por %p150, %p151
      %p153 = scmp.ne.s32.totalorder %s139, %s140
      %p154 = scmp.eq.s32.totalorder %s55, 7
      %p155 = por %p153, %p154
      %p157 = scmp.ne.s32.totalorder %s140, %s156
      %p158 = scmp.eq.s32.totalorder %s55, 0
      %p159 = por %p157, %p158
      %s160 = ssub.s32 %s49, %s56
      %p161 = scmp.eq.s32.totalorder %s160, 0
      %s163 = sadd.s32 %s162, 1
      %s164 = scalar_select %p161, %s162, %s163
      %p167 = pneg %p161
      %p168 = scmp.eq.s32.totalorder %s49, 7
      %p169 = por %p167, %p168
      %p170 = scmp.ne.s32.totalorder %s162, %s165
      %p171 = scmp.eq.s32.totalorder %s49, 0
      %p172 = por %p170, %p171
      %p173 = scmp.ne.s32.totalorder %s162, %s165
      %p174 = scmp.eq.s32.totalorder %s54, 7
      %p175 = por %p173, %p174
      %p176 = scmp.ne.s32.totalorder %s165, %s166
      %p177 = scmp.eq.s32.totalorder %s54, 0
      %p178 = por %p176, %p177
      %p179 = scmp.ne.s32.totalorder %s165, %s166
      %p180 = scmp.eq.s32.totalorder %s55, 7
      %p181 = por %p179, %p180
      %p183 = scmp.ne.s32.totalorder %s166, %s182
      %p184 = scmp.eq.s32.totalorder %s55, 0
      %p185 = por %p183, %p184
      %s186 = ssub.s32 %s49, %s56
      %p187 = scmp.eq.s32.totalorder %s186, 0
      %s189 = sadd.s32 %s188, 1
      %s190 = scalar_select %p187, %s188, %s189
      %p193 = pneg %p187
      %p194 = scmp.eq.s32.totalorder %s49, 7
      %p195 = por %p193, %p194
      %p196 = scmp.ne.s32.totalorder %s188, %s191
      %p197 = scmp.eq.s32.totalorder %s49, 0
      %p198 = por %p196, %p197
      %p199 = scmp.ne.s32.totalorder %s188, %s191
      %p200 = scmp.eq.s32.totalorder %s54, 7
      %p201 = por %p199, %p200
      %p202 = scmp.ne.s32.totalorder %s191, %s192
      %p203 = scmp.eq.s32.totalorder %s54, 0
      %p204 = por %p202, %p203
      %p205 = scmp.ne.s32.totalorder %s191, %s192
      %p206 = scmp.eq.s32.totalorder %s55, 7
      %p207 = por %p205, %p206
      %p209 = scmp.ne.s32.totalorder %s192, %s208
      %p210 = scmp.eq.s32.totalorder %s55, 0
      %p211 = por %p209, %p210
      %s212 = ssub.s32 %s49, %s56
      %p213 = scmp.eq.s32.totalorder %s212, 0
      %s215 = sadd.s32 %s214, 1
      %s216 = scalar_select %p213, %s214, %s215
      %p219 = pneg %p213
      %p220 = scmp.eq.s32.totalorder %s49, 7
      %p221 = por %p219, %p220
      %p222 = scmp.ne.s32.totalorder %s214, %s217
      %p223 = scmp.eq.s32.totalorder %s49, 0
      %p224 = por %p222, %p223
      %p225 = scmp.ne.s32.totalorder %s214, %s217
      %p226 = scmp.eq.s32.totalorder %s54, 7
      %p227 = por %p225, %p226
      %p228 = scmp.ne.s32.totalorder %s217, %s218
      %p229 = scmp.eq.s32.totalorder %s54, 0
      %p230 = por %p228, %p229
      %p231 = scmp.ne.s32.totalorder %s217, %s218
      %p232 = scmp.eq.s32.totalorder %s55, 7
      %p233 = por %p231, %p232
      %p235 = scmp.ne.s32.totalorder %s218, %s234
      %p236 = scmp.eq.s32.totalorder %s55, 0
      %p237 = por %p235, %p236
      %s238 = sld [smem:[#allocation4 + %s49]]
      %s239 = sld [smem:[#allocation4 + %s56]]
      %s240 = ssub.s32 %s238, %s239
      %p241 = scmp.eq.s32.totalorder %s240, 0
      %s243 = sadd.s32 %s242, 1
      %s244 = scalar_select %p241, %s242, %s243
      %p247 = pneg %p241
      %p248 = scmp.eq.s32.totalorder %s49, 7
      %p249 = por %p247, %p248
      %p250 = scmp.ne.s32.totalorder %s242, %s245
      %p251 = scmp.eq.s32.totalorder %s49, 0
      %p252 = por %p250, %p251
      %p253 = scmp.ne.s32.totalorder %s242, %s245
      %p254 = scmp.eq.s32.totalorder %s54, 7
      %p255 = por %p253, %p254
      %p256 = scmp.ne.s32.totalorder %s245, %s246
      %p257 = scmp.eq.s32.totalorder %s54, 0
      %p258 = por %p256, %p257
      %p259 = scmp.ne.s32.totalorder %s245, %s246
      %p260 = scmp.eq.s32.totalorder %s55, 7
      %p261 = por %p259, %p260
      %p263 = scmp.ne.s32.totalorder %s246, %s262
      %p264 = scmp.eq.s32.totalorder %s55, 0
      %p265 = por %p263, %p264
      %p266 = scmp.le.s32.totalorder 1, %s49
      %p267 = scmp.lt.s32.totalorder %s49, 9
      %p268 = pnand %p266, %p267
      %p269 = pneg %p268
      // Predicated region
      $region9: #{tpu_custom_call.1} parent=5 // pred_check
        _
      $region10: #{tpu_custom_call.1} parent=5 // pred_check_branch
        %271 = sbr.rel (%p268) target = $region12
      $region11: #{tpu_custom_call.1} parent=5 // pred_region
        %s272 = ssub.s32 %s49, 1
        // Predicated region
        $region13: #{tpu_custom_call.1} parent=11 // pred_check
          %p273 = pneg %p70
        $region14: #{tpu_custom_call.1} parent=11 // pred_check_branch
          %275 = sbr.rel (%p273) target = $region16
        $region15: #{tpu_custom_call.1} parent=11 // pred_region
          %s277 = ssub.s32 128, 128
          %278 = vsyncadd [#allocation11], %s277
          %s280 = sshll.u32 %s4, 4
          %s281 = int_to_ptr.vmem [resolvable:$true] %s280
          %283 = dma.vmem_to_smem %s281, 128, [#allocation8], [#allocation11]
        $region16: #{tpu_custom_call.1} parent=11 // pred_fallthru
          _
      $region12: #{tpu_custom_call.1} parent=5 // pred_fallthru
        _
      %p284 = scmp.lt.s32.totalorder %s49, 8
      // Predicated region
      $region17: #{tpu_custom_call.1} parent=5 // pred_check
        %p285 = pneg %p284
      $region18: #{tpu_custom_call.1} parent=5 // pred_check_branch
        %287 = sbr.rel (%p285) target = $region20
      $region19: #{tpu_custom_call.1} parent=5 // pred_region
        // Predicated region
        $region21: #{tpu_custom_call.1} parent=19 // pred_check
          %p288 = pneg %p92
        $region22: #{tpu_custom_call.1} parent=19 // pred_check_branch
          %290 = sbr.rel (%p288) target = $region24
        $region23: #{tpu_custom_call.1} parent=19 // pred_region
          %s291 = sand.u32 %s82, 1
          %s292 = scalar_lea.sflag [#allocation9], %s291
          %s293 = sand.u32 %s82, 1
          %s294 = smul.addr %s293, 8
          %s295 = scalar_lea.vmem [#allocation12], %s294
          %s296 = sld [smem:[#allocation5 + %s49]]
          %s298 = ssub.s32 128, 128
          %299 = vsyncadd %s292, %s298
          %s300 = smul.addr %s296, 2
          %s301 = smul.addr %s300, 64
          %s302 = scalar_lea.hbm %s5, %s301
          %s303 = sshll.u32 %s295, 4
          %s304 = int_to_ptr.vmem [resolvable:$true] %s303
          %309 = dma.hbm_to_vmem [thread:$0]  %s302, 128, %s304, %s292, 64, 64, 4
        $region24: #{tpu_custom_call.1} parent=19 // pred_fallthru
          _
        // Predicated region
        $region25: #{tpu_custom_call.1} parent=19 // pred_check
          %p310 = pneg %p120
        $region26: #{tpu_custom_call.1} parent=19 // pred_check_branch
          %312 = sbr.rel (%p310) target = $region28
        $region27: #{tpu_custom_call.1} parent=19 // pred_region
          %s313 = sand.u32 %s49, 1
          %s314 = scalar_lea.sflag [#allocation14], %s313
          %s315 = sand.u32 %s110, 1
          %s316 = smul.addr %s315, 8
          %s317 = scalar_lea.vmem [#allocation13], %s316
          %s318 = sld [smem:[#allocation4 + %s49]]
          %s320 = ssub.s32 128, 128
          %321 = vsyncadd %s314, %s320
          %s322 = smul.addr %s318, 2
          %s323 = smul.addr %s322, 64
          %s324 = scalar_lea.hbm %s6, %s323
          %s325 = sshll.u32 %s317, 4
          %s326 = int_to_ptr.vmem [resolvable:$true] %s325
          %331 = dma.hbm_to_vmem [thread:$0]  %s324, 128, %s326, %s314, 64, 64, 4
        $region28: #{tpu_custom_call.1} parent=19 // pred_fallthru
          _
        // Predicated region
        $region29: #{tpu_custom_call.1} parent=19 // pred_check
          %p332 = pneg %p146
        $region30: #{tpu_custom_call.1} parent=19 // pred_check_branch
          %334 = sbr.rel (%p332) target = $region32
        $region31: #{tpu_custom_call.1} parent=19 // pred_region
          %s335 = sand.u32 %s49, 1
          %s336 = scalar_lea.sflag [#allocation14], %s335
          %s337 = sand.u32 %s136, 1
          %s338 = smul.addr %s337, 8
          %s339 = scalar_lea.vmem [#allocation15], %s338
          %s341 = ssub.s32 128, 128
          %342 = vsyncadd %s336, %s341
          %s343 = smul.addr %s49, 2
          %s344 = smul.addr %s343, 64
          %s345 = scalar_lea.hbm %s7, %s344
          %s346 = sshll.u32 %s339, 4
          %s347 = int_to_ptr.vmem [resolvable:$true] %s346
          %352 = dma.hbm_to_vmem [thread:$0]  %s345, 128, %s347, %s336, 64, 64, 4
        $region32: #{tpu_custom_call.1} parent=19 // pred_fallthru
          _
        // Predicated region
        $region33: #{tpu_custom_call.1} parent=19 // pred_check
          %p353 = pneg %p172
        $region34: #{tpu_custom_call.1} parent=19 // pred_check_branch
          %355 = sbr.rel (%p353) target = $region36
        $region35: #{tpu_custom_call.1} parent=19 // pred_region
          %s356 = sand.u32 %s49, 1
          %s357 = scalar_lea.sflag [#allocation17], %s356
          %s358 = sand.u32 %s162, 1
          %s359 = smul.addr %s358, 8
          %s360 = scalar_lea.vmem [#allocation16], %s359
          %s362 = ssub.s32 128, 128
          %363 = vsyncadd %s357, %s362
          %s364 = smul.addr %s49, 2
          %s365 = smul.addr %s364, 64
          %s366 = scalar_lea.hbm %s8, %s365
          %s367 = sshll.u32 %s360, 4
          %s368 = int_to_ptr.vmem [resolvable:$true] %s367
          %373 = dma.hbm_to_vmem [thread:$0]  %s366, 128, %s368, %s357, 64, 64, 4
        $region36: #{tpu_custom_call.1} parent=19 // pred_fallthru
          _
        // Predicated region
        $region37: #{tpu_custom_call.1} parent=19 // pred_check
          %p374 = pneg %p198
        $region38: #{tpu_custom_call.1} parent=19 // pred_check_branch
          %376 = sbr.rel (%p374) target = $region40
        $region39: #{tpu_custom_call.1} parent=19 // pred_region
          %s377 = sand.u32 %s49, 1
          %s378 = scalar_lea.sflag [#allocation17], %s377
          %s379 = sand.u32 %s188, 1
          %s380 = smul.addr %s379, 8
          %s381 = scalar_lea.vmem [#allocation18], %s380
          %s383 = ssub.s32 128, 128
          %384 = vsyncadd %s378, %s383
          %s385 = smul.addr %s49, 2
          %s386 = smul.addr %s385, 64
          %s387 = scalar_lea.hbm %s9, %s386
          %s388 = sshll.u32 %s381, 4
          %s389 = int_to_ptr.vmem [resolvable:$true] %s388
          %394 = dma.hbm_to_vmem [thread:$0]  %s387, 128, %s389, %s378, 64, 64, 4
        $region40: #{tpu_custom_call.1} parent=19 // pred_fallthru
          _
        // Predicated region
        $region41: #{tpu_custom_call.1} parent=19 // pred_check
          %p395 = pneg %p224
        $region42: #{tpu_custom_call.1} parent=19 // pred_check_branch
          %397 = sbr.rel (%p395) target = $region44
        $region43: #{tpu_custom_call.1} parent=19 // pred_region
          %s398 = sand.u32 %s214, 1
          %s399 = scalar_lea.sflag [#allocation20], %s398
          %s400 = sand.u32 %s214, 1
          %s401 = smul.addr %s400, 8
          %s402 = scalar_lea.vmem [#allocation19], %s401
          %s404 = ssub.s32 128, 128
          %405 = vsyncadd %s399, %s404
          %s406 = smul.addr %s49, 128
          %s407 = scalar_lea.hbm %s10, %s406
          %s409 = sshll.u32 %s402, 4
          %s410 = int_to_ptr.vmem [resolvable:$true] %s409
          %412 = dma.hbm_to_vmem [thread:$0]  %s407, 128, %s410, %s399
        $region44: #{tpu_custom_call.1} parent=19 // pred_fallthru
          _
      $region20: #{tpu_custom_call.1} parent=5 // pred_fallthru
        _
      %p413 = scmp.le.s32.totalorder 1, %s49
      %p414 = scmp.lt.s32.totalorder %s49, 9
      %p415 = pnand %p413, %p414
      %p416 = pneg %p415
      // Predicated region
      $region45: #{tpu_custom_call.1} parent=5 // pred_check
        _
      $region46: #{tpu_custom_call.1} parent=5 // pred_check_branch
        %418 = sbr.rel (%p415) target = $region48
      $region47: #{tpu_custom_call.1} parent=5 // pred_region
        %s419 = ssub.s32 %s49, 1
        // Predicated region
        $region49: #{tpu_custom_call.1} parent=47 // pred_check
          %p420 = pneg %p70
        $region50: #{tpu_custom_call.1} parent=47 // pred_check_branch
          %422 = sbr.rel (%p420) target = $region52
        $region51: #{tpu_custom_call.1} parent=47 // pred_region
          %423 = dma.done [#allocation11], 128
        $region52: #{tpu_custom_call.1} parent=47 // pred_fallthru
          _
        %s424 = sand.u32 %s85, 1
        %s425 = scalar_lea.sflag [#allocation9], %s424
        %s426 = sand.u32 %s85, 1
        %s427 = smul.addr %s426, 8
        %s428 = scalar_lea.vmem [#allocation12], %s427
        // Predicated region
        $region53: #{tpu_custom_call.1} parent=47 // pred_check
          %p429 = pneg %p98
        $region54: #{tpu_custom_call.1} parent=47 // pred_check_branch
          %431 = sbr.rel (%p429) target = $region56
        $region55: #{tpu_custom_call.1} parent=47 // pred_region
          %432 = dma.done %s425, 128
        $region56: #{tpu_custom_call.1} parent=47 // pred_fallthru
          _
        %s433 = sand.u32 %s54, 1
        %s434 = scalar_lea.sflag [#allocation14], %s433
        %s435 = sand.u32 %s113, 1
        %s436 = smul.addr %s435, 8
        %s437 = scalar_lea.vmem [#allocation13], %s436
        // Predicated region
        $region57: #{tpu_custom_call.1} parent=47 // pred_check
          %p438 = pneg %p126
        $region58: #{tpu_custom_call.1} parent=47 // pred_check_branch
          %440 = sbr.rel (%p438) target = $region60
        $region59: #{tpu_custom_call.1} parent=47 // pred_region
          %441 = dma.done %s434, 128
        $region60: #{tpu_custom_call.1} parent=47 // pred_fallthru
          _
        %s442 = sand.u32 %s54, 1
        %s443 = scalar_lea.sflag [#allocation14], %s442
        %s444 = sand.u32 %s139, 1
        %s445 = smul.addr %s444, 8
        %s446 = scalar_lea.vmem [#allocation15], %s445
        // Predicated region
        $region61: #{tpu_custom_call.1} parent=47 // pred_check
          %p447 = pneg %p152
        $region62: #{tpu_custom_call.1} parent=47 // pred_check_branch
          %449 = sbr.rel (%p447) target = $region64
        $region63: #{tpu_custom_call.1} parent=47 // pred_region
          %450 = dma.done %s443, 128
        $region64: #{tpu_custom_call.1} parent=47 // pred_fallthru
          _
        %s451 = sand.u32 %s54, 1
        %s452 = scalar_lea.sflag [#allocation17], %s451
        %s453 = sand.u32 %s165, 1
        %s454 = smul.addr %s453, 8
        %s455 = scalar_lea.vmem [#allocation16], %s454
        // Predicated region
        $region65: #{tpu_custom_call.1} parent=47 // pred_check
          %p456 = pneg %p178
        $region66: #{tpu_custom_call.1} parent=47 // pred_check_branch
          %458 = sbr.rel (%p456) target = $region68
        $region67: #{tpu_custom_call.1} parent=47 // pred_region
          %459 = dma.done %s452, 128
        $region68: #{tpu_custom_call.1} parent=47 // pred_fallthru
          _
        %s460 = sand.u32 %s54, 1
        %s461 = scalar_lea.sflag [#allocation17], %s460
        %s462 = sand.u32 %s191, 1
        %s463 = smul.addr %s462, 8
        %s464 = scalar_lea.vmem [#allocation18], %s463
        // Predicated region
        $region69: #{tpu_custom_call.1} parent=47 // pred_check
          %p465 = pneg %p204
        $region70: #{tpu_custom_call.1} parent=47 // pred_check_branch
          %467 = sbr.rel (%p465) target = $region72
        $region71: #{tpu_custom_call.1} parent=47 // pred_region
          %468 = dma.done %s461, 128
        $region72: #{tpu_custom_call.1} parent=47 // pred_fallthru
          _
        %s469 = sand.u32 %s217, 1
        %s470 = scalar_lea.sflag [#allocation20], %s469
        %s471 = sand.u32 %s217, 1
        %s472 = smul.addr %s471, 8
        %s473 = scalar_lea.vmem [#allocation19], %s472
        // Predicated region
        $region73: #{tpu_custom_call.1} parent=47 // pred_check
          %p474 = pneg %p230
        $region74: #{tpu_custom_call.1} parent=47 // pred_check_branch
          %476 = sbr.rel (%p474) target = $region76
        $region75: #{tpu_custom_call.1} parent=47 // pred_region
          %477 = dma.done %s470, 128
        $region76: #{tpu_custom_call.1} parent=47 // pred_fallthru
          _
        %478 = sfence
        %p479 = pneg %p70
        %p480 = pneg %p67
        %s481 = sand.u32 %s85, 1
        %s482 = scalar_lea.sflag [#allocation9], %s481
        %s483 = sand.u32 %s85, 1
        %s484 = smul.addr %s483, 8
        %s485 = scalar_lea.vmem [#allocation12], %s484
        %p486 = pneg %p98
        %p487 = pneg %p95
        %s488 = sand.u32 %s54, 1
        %s489 = scalar_lea.sflag [#allocation14], %s488
        %s490 = sand.u32 %s113, 1
        %s491 = smul.addr %s490, 8
        %s492 = scalar_lea.vmem [#allocation13], %s491
        %p493 = pneg %p126
        %p494 = pneg %p123
        %s495 = sand.u32 %s54, 1
        %s496 = scalar_lea.sflag [#allocation14], %s495
        %s497 = sand.u32 %s139, 1
        %s498 = smul.addr %s497, 8
        %s499 = scalar_lea.vmem [#allocation15], %s498
        %p500 = pneg %p152
        %p501 = pneg %p149
        %s502 = sand.u32 %s54, 1
        %s503 = scalar_lea.sflag [#allocation17], %s502
        %s504 = sand.u32 %s165, 1
        %s505 = smul.addr %s504, 8
        %s506 = scalar_lea.vmem [#allocation16], %s505
        %p507 = pneg %p178
        %p508 = pneg %p175
        %s509 = sand.u32 %s54, 1
        %s510 = scalar_lea.sflag [#allocation17], %s509
        %s511 = sand.u32 %s191, 1
        %s512 = smul.addr %s511, 8
        %s513 = scalar_lea.vmem [#allocation18], %s512
        %p514 = pneg %p204
        %p515 = pneg %p201
        %s516 = sand.u32 %s217, 1
        %s517 = scalar_lea.sflag [#allocation20], %s516
        %s518 = sand.u32 %s217, 1
        %s519 = smul.addr %s518, 8
        %s520 = scalar_lea.vmem [#allocation19], %s519
        %p521 = pneg %p230
        %p522 = pneg %p227
        %p523 = pneg %p258
        %p524 = pneg %p255
        %s525 = sand.u32 %s245, 1
        %s526 = scalar_lea.sflag [#allocation10], %s525
        %s527 = sand.u32 %s245, 1
        %s528 = smul.addr %s527, 8
        %s529 = scalar_lea.vmem [#allocation21], %s528
        %s530 = sld [smem:[#allocation5 + %s54]]
        %s531 = sld [smem:[#allocation4 + %s54]]
        %s532 = sld [smem:[#allocation4 + %s54]]
        %s534 = sld [smem:[#allocation6 + %s54]]
        %p535 = scmp.eq.s32.totalorder %s534, 1
        // Predicated region
        $region77: #{tpu_custom_call.1} parent=47 // pred_check
          %p536 = pneg %p535
        $region78: #{tpu_custom_call.1} parent=47 // pred_check_branch
          %538 = sbr.rel (%p536) target = $region80
        $region79: #{tpu_custom_call.1} parent=47 // pred_region
          %vm539 = vcmask 261120
          %540 = vst.msk [vmem:[#allocation2] sm:$0xff] %vm539, 0.0
          %541 = vst.msk [vmem:[#allocation2 + $0x8] sm:$0xff] %vm539, 0.0
        $region80: #{tpu_custom_call.1} parent=47 // pred_fallthru
          _
        %v542 = vld [vmem:[%s428] sm:$0xf]
        %v543 = vld [vmem:[%s428 + $0x4] sm:$0xf]
        %v544 = vld [vmem:[%s437] sm:$0xf]
        %v545 = vld [vmem:[%s437 + $0x4] sm:$0xf]
        %v546 = vld [vmem:[%s446] sm:$0xf]
        %v547 = vld [vmem:[%s446 + $0x4] sm:$0xf]
        %v548 = vunpack.c.l.bf16 %v546
        %v549 = vunpack.c.l.bf16 %v547
        %v550 = vld [vmem:[%s473] sm:$0x1]
        %v551 = vld [vmem:[%s473 + $0x1] sm:$0x1]
        %v552 = vld [vmem:[%s473 + $0x2] sm:$0x1]
        %v553 = vld [vmem:[%s455] sm:$0xf]
        %v554 = vld [vmem:[%s455 + $0x4] sm:$0xf]
        %v555 = vlaneseq
        %v556 = vshrl.u32 %v555, 7
        %v557 = vsub.s32 0, %v556
        %v558 = vrot.slane %v550, %v557
        %v561 = vunpack.c.l.b16 %v542
        %v562 = vunpack.c.l.b16 %v543
        %v563 = vpack.c.b16 %v562, %v561
        %v566 = vunpack.c.l.b16 %v553
        %v567 = vunpack.c.l.b16 %v554
        %v568 = vpack.c.b16 %v567, %v566
        %vm570 = vcmask 130048
        %v572 = vsel %vm570, %v563, 0
        %574 = vmatprep.subr.bf16.mxu0 0
        %575 = vmatpush1.bf16.msra.mxu0 %v568
        %576 = vmatprep.subr.bf16.mxu0 0
        %577 = vmatpush1.bf16.msra.mxu0 0
        %578 = vmatprep.subr.bf16.mxu0 0
        %579 = vmatpush1.bf16.msra.mxu0 0
        %580 = vmatprep.subr.bf16.mxu0 0
        %581 = vmatpush1.bf16.msra.mxu0 0
        %582 = vmatprep.subr.bf16.mxu0 0
        %583 = vmatpush1.bf16.msra.mxu0 0
        %584 = vmatprep.subr.bf16.mxu0 0
        %585 = vmatpush1.bf16.msra.mxu0 0
        %586 = vmatprep.subr.bf16.mxu0 0
        %587 = vmatpush1.bf16.msra.mxu0 0
        %588 = vmatprep.subr.bf16.mxu0 0
        %589 = vmatpush1.bf16.msra.mxu0 0
        %590 = vmatprep.subr.bf16.mxu0 0
        %591 = vmatpush1.bf16.msra.mxu0 0
        %592 = vmatprep.subr.bf16.mxu0 0
        %593 = vmatpush1.bf16.msra.mxu0 0
        %594 = vmatprep.subr.bf16.mxu0 0
        %595 = vmatpush1.bf16.msra.mxu0 0
        %596 = vmatprep.subr.bf16.mxu0 0
        %597 = vmatpush1.bf16.msra.mxu0 0
        %598 = vmatprep.subr.bf16.mxu0 0
        %599 = vmatpush1.bf16.msra.mxu0 0
        %600 = vmatprep.subr.bf16.mxu0 0
        %601 = vmatpush1.bf16.msra.mxu0 0
        %602 = vmatprep.subr.bf16.mxu0 0
        %603 = vmatpush1.bf16.msra.mxu0 0
        %604 = vmatprep.subr.bf16.mxu0 0
        %605 = vmatpush1.bf16.msra.mxu0 0
        %606 = vmatprep.mubr.bf16.mxu0 0
        %607 = vmatmul.mubr.bf16.gmra.mrb[0].mxu0 %v572
        %v608 = vpop.f32.mrb[0].mxu0
        %v609 = vadd.f32 %v558, %v608
        %v610 = vpop.f32.mrb[0].mxu0
        %v611 = vpop.f32.mrb[0].mxu0
        %v612 = vadd.f32 %v558, %v611
        %v613 = vpop.f32.mrb[0].mxu0
        %614 = vdwg.mxu0
        %v615 = vld [vmem:[%s464] sm:$0xf]
        %v616 = vld [vmem:[%s464 + $0x4] sm:$0xf]
        %v617 = vlaneseq
        %v618 = vshrl.u32 %v617, 7
        %v619 = vsub.s32 0, %v618
        %v620 = vrot.slane %v551, %v619
        %v623 = vunpack.c.l.b16 %v544
        %v624 = vunpack.c.l.b16 %v545
        %v625 = vpack.c.b16 %v624, %v623
        %v628 = vunpack.c.l.b16 %v615
        %v629 = vunpack.c.l.b16 %v616
        %v630 = vpack.c.b16 %v629, %v628
        %v633 = vsel %vm570, %v625, 0
        %635 = vmatprep.subr.bf16.mxu0 0
        %636 = vmatpush1.bf16.msra.mxu0 %v630
        %637 = vmatprep.subr.bf16.mxu0 0
        %638 = vmatpush1.bf16.msra.mxu0 0
        %639 = vmatprep.subr.bf16.mxu0 0
        %640 = vmatpush1.bf16.msra.mxu0 0
        %641 = vmatprep.subr.bf16.mxu0 0
        %642 = vmatpush1.bf16.msra.mxu0 0
        %643 = vmatprep.subr.bf16.mxu0 0
        %644 = vmatpush1.bf16.msra.mxu0 0
        %645 = vmatprep.subr.bf16.mxu0 0
        %646 = vmatpush1.bf16.msra.mxu0 0
        %647 = vmatprep.subr.bf16.mxu0 0
        %648 = vmatpush1.bf16.msra.mxu0 0
        %649 = vmatprep.subr.bf16.mxu0 0
        %650 = vmatpush1.bf16.msra.mxu0 0
        %651 = vmatprep.subr.bf16.mxu0 0
        %652 = vmatpush1.bf16.msra.mxu0 0
        %653 = vmatprep.subr.bf16.mxu0 0
        %654 = vmatpush1.bf16.msra.mxu0 0
        %655 = vmatprep.subr.bf16.mxu0 0
        %656 = vmatpush1.bf16.msra.mxu0 0
        %657 = vmatprep.subr.bf16.mxu0 0
        %658 = vmatpush1.bf16.msra.mxu0 0
        %659 = vmatprep.subr.bf16.mxu0 0
        %660 = vmatpush1.bf16.msra.mxu0 0
        %661 = vmatprep.subr.bf16.mxu0 0
        %662 = vmatpush1.bf16.msra.mxu0 0
        %663 = vmatprep.subr.bf16.mxu0 0
        %664 = vmatpush1.bf16.msra.mxu0 0
        %665 = vmatprep.subr.bf16.mxu0 0
        %666 = vmatpush1.bf16.msra.mxu0 0
        %667 = vmatprep.mubr.bf16.mxu0 0
        %668 = vmatmul.mubr.bf16.gmra.mrb[0].mxu0 %v633
        %v669 = vpop.f32.mrb[0].mxu0
        %v670 = vadd.f32 %v620, %v669
        %v671 = vpop.f32.mrb[0].mxu0
        %v672 = vpop.f32.mrb[0].mxu0
        %v673 = vadd.f32 %v620, %v672
        %v674 = vpop.f32.mrb[0].mxu0
        %675 = vdwg.mxu0
        %676 = vxpose.xlu0.b32.start [1/16] %v609, 128
        %677 = vxpose.xlu0.b32.cont [2/16] %v612, 128
        %678 = vxpose.xlu0.b32.cont [3/16] 0.0, 128
        %679 = vxpose.xlu0.b32.cont [4/16] 0.0, 128
        %680 = vxpose.xlu0.b32.cont [5/16] 0.0, 128
        %681 = vxpose.xlu0.b32.cont [6/16] 0.0, 128
        %682 = vxpose.xlu0.b32.cont [7/16] 0.0, 128
        %683 = vxpose.xlu0.b32.cont [8/16] 0.0, 128
        %684 = vxpose.xlu0.b32.cont [9/16] 0.0, 128
        %685 = vxpose.xlu0.b32.cont [10/16] 0.0, 128
        %686 = vxpose.xlu0.b32.cont [11/16] 0.0, 128
        %687 = vxpose.xlu0.b32.cont [12/16] 0.0, 128
        %688 = vxpose.xlu0.b32.cont [13/16] 0.0, 128
        %689 = vxpose.xlu0.b32.cont [14/16] 0.0, 128
        %690 = vxpose.xlu0.b32.cont [15/16] 0.0, 128
        %691 = vxpose.xlu0.b32.end [16/16] 0.0, 128
        %v692 = vpop.trf.xlu0
        %v693 = vpop.trf.xlu0
        %v694 = vpop.trf.xlu0
        %v695 = vpop.trf.xlu0
        %v696 = vpop.trf.xlu0
        %v697 = vpop.trf.xlu0
        %v698 = vpop.trf.xlu0
        %v699 = vpop.trf.xlu0
        %v700 = vpop.trf.xlu0
        %v701 = vpop.trf.xlu0
        %v702 = vpop.trf.xlu0
        %v703 = vpop.trf.xlu0
        %v704 = vpop.trf.xlu0
        %v705 = vpop.trf.xlu0
        %v706 = vpop.trf.xlu0
        %v707 = vpop.trf.xlu0
        %709 = vset.pattern.permute.xlu0 0
        %710 = vperm.xlu0 %709, %v670
        %v711 = vpop.permute.xlu0 %710
        %714 = vset.pattern.permute.xlu0 0
        %715 = vperm.xlu0 %714, %v673
        %v716 = vpop.permute.xlu0 %715
        %v718 = vlaneseq
        %v719 = vshrl.u32 %v718, 7
        %v720 = vsub.s32 0, %v719
        %v721 = vrot.slane %v692, %v720
        %v722 = vadd.f32 %v711, %v721
        %v723 = vadd.f32 %v716, %v721
        %s724 = smul.u32 %s54, 128
        %s725 = sld [smem:[#allocation8 + %s724]]
        %v726 = vmul.f32 %v722, 0.2
        %v727 = vmul.f32 %v723, 0.2
        %v728 = vmax.f32 %v722, %v726
        %v729 = vmax.f32 %v723, %v727
        %v730 = vstv %s725
        %v731 = vmul.f32 %v730, %v728
        %v732 = vmul.f32 %v730, %v729
        %v733 = vadd.f32 %v731, 0.0
        %v734 = vadd.f32 %v732, 0.0
        %735 = vset.pattern.permute.xlu0 1
        %736 = vperm.xlu0 %735, %v670
        %v737 = vpop.permute.xlu0 %736
        %739 = vset.pattern.permute.xlu0 1
        %740 = vperm.xlu0 %739, %v673
        %v741 = vpop.permute.xlu0 %740
        %v743 = vlaneseq
        %v744 = vshrl.u32 %v743, 7
        %v745 = vsub.s32 1, %v744
        %v746 = vrot.slane %v692, %v745
        %v747 = vadd.f32 %v737, %v746
        %v748 = vadd.f32 %v741, %v746
        %s749 = sadd.s32 %s724, 1
        %s750 = sld [smem:[#allocation8 + %s749]]
        %v751 = vmul.f32 %v747, 0.2
        %v752 = vmul.f32 %v748, 0.2
        %v753 = vmax.f32 %v747, %v751
        %v754 = vmax.f32 %v748, %v752
        %v755 = vstv %s750
        %v756 = vmul.f32 %v755, %v753
        %v757 = vmul.f32 %v755, %v754
        %v758 = vadd.f32 %v733, %v756
        %v759 = vadd.f32 %v734, %v757
        %760 = vset.pattern.permute.xlu0 2
        %761 = vperm.xlu0 %760, %v670
        %v762 = vpop.permute.xlu0 %761
        %764 = vset.pattern.permute.xlu0 2
        %765 = vperm.xlu0 %764, %v673
        %v766 = vpop.permute.xlu0 %765
        %v768 = vlaneseq
        %v769 = vshrl.u32 %v768, 7
        %v770 = vsub.s32 2, %v769
        %v771 = vrot.slane %v692, %v770
        %v772 = vadd.f32 %v762, %v771
        %v773 = vadd.f32 %v766, %v771
        %s774 = sadd.s32 %s724, 2
        %s775 = sld [smem:[#allocation8 + %s774]]
        %v776 = vmul.f32 %v772, 0.2
        %v777 = vmul.f32 %v773, 0.2
        %v778 = vmax.f32 %v772, %v776
        %v779 = vmax.f32 %v773, %v777
        %v780 = vstv %s775
        %v781 = vmul.f32 %v780, %v778
        %v782 = vmul.f32 %v780, %v779
        %v783 = vadd.f32 %v758, %v781
        %v784 = vadd.f32 %v759, %v782
        %785 = vset.pattern.permute.xlu0 3
        %786 = vperm.xlu0 %785, %v670
        %v787 = vpop.permute.xlu0 %786
        %789 = vset.pattern.permute.xlu0 3
        %790 = vperm.xlu0 %789, %v673
        %v791 = vpop.permute.xlu0 %790
        %v793 = vlaneseq
        %v794 = vshrl.u32 %v793, 7
        %v795 = vsub.s32 3, %v794
        %v796 = vrot.slane %v692, %v795
        %v797 = vadd.f32 %v787, %v796
        %v798 = vadd.f32 %v791, %v796
        %s799 = sadd.s32 %s724, 3
        %s800 = sld [smem:[#allocation8 + %s799]]
        %v801 = vmul.f32 %v797, 0.2
        %v802 = vmul.f32 %v798, 0.2
        %v803 = vmax.f32 %v797, %v801
        %v804 = vmax.f32 %v798, %v802
        %v805 = vstv %s800
        %v806 = vmul.f32 %v805, %v803
        %v807 = vmul.f32 %v805, %v804
        %v808 = vadd.f32 %v783, %v806
        %v809 = vadd.f32 %v784, %v807
        %810 = vset.pattern.permute.xlu0 4
        %811 = vperm.xlu0 %810, %v670
        %v812 = vpop.permute.xlu0 %811
        %814 = vset.pattern.permute.xlu0 4
        %815 = vperm.xlu0 %814, %v673
        %v816 = vpop.permute.xlu0 %815
        %v818 = vlaneseq
        %v819 = vshrl.u32 %v818, 7
        %v820 = vsub.s32 4, %v819
        %v821 = vrot.slane %v692, %v820
        %v822 = vadd.f32 %v812, %v821
        %v823 = vadd.f32 %v816, %v821
        %s824 = sadd.s32 %s724, 4
        %s825 = sld [smem:[#allocation8 + %s824]]
        %v826 = vmul.f32 %v822, 0.2
        %v827 = vmul.f32 %v823, 0.2
        %v828 = vmax.f32 %v822, %v826
        %v829 = vmax.f32 %v823, %v827
        %v830 = vstv %s825
        %v831 = vmul.f32 %v830, %v828
        %v832 = vmul.f32 %v830, %v829
        %v833 = vadd.f32 %v808, %v831
        %v834 = vadd.f32 %v809, %v832
        %835 = vset.pattern.permute.xlu0 5
        %836 = vperm.xlu0 %835, %v670
        %v837 = vpop.permute.xlu0 %836
        %839 = vset.pattern.permute.xlu0 5
        %840 = vperm.xlu0 %839, %v673
        %v841 = vpop.permute.xlu0 %840
        %v843 = vlaneseq
        %v844 = vshrl.u32 %v843, 7
        %v845 = vsub.s32 5, %v844
        %v846 = vrot.slane %v692, %v845
        %v847 = vadd.f32 %v837, %v846
        %v848 = vadd.f32 %v841, %v846
        %s849 = sadd.s32 %s724, 5
        %s850 = sld [smem:[#allocation8 + %s849]]
        %v851 = vmul.f32 %v847, 0.2
        %v852 = vmul.f32 %v848, 0.2
        %v853 = vmax.f32 %v847, %v851
        %v854 = vmax.f32 %v848, %v852
        %v855 = vstv %s850
        %v856 = vmul.f32 %v855, %v853
        %v857 = vmul.f32 %v855, %v854
        %v858 = vadd.f32 %v833, %v856
        %v859 = vadd.f32 %v834, %v857
        %860 = vset.pattern.permute.xlu0 6
        %861 = vperm.xlu0 %860, %v670
        %v862 = vpop.permute.xlu0 %861
        %864 = vset.pattern.permute.xlu0 6
        %865 = vperm.xlu0 %864, %v673
        %v866 = vpop.permute.xlu0 %865
        %v868 = vlaneseq
        %v869 = vshrl.u32 %v868, 7
        %v870 = vsub.s32 6, %v869
        %v871 = vrot.slane %v692, %v870
        %v872 = vadd.f32 %v862, %v871
        %v873 = vadd.f32 %v866, %v871
        %s874 = sadd.s32 %s724, 6
        %s875 = sld [smem:[#allocation8 + %s874]]
        %v876 = vmul.f32 %v872, 0.2
        %v877 = vmul.f32 %v873, 0.2
        %v878 = vmax.f32 %v872, %v876
        %v879 = vmax.f32 %v873, %v877
        %v880 = vstv %s875
        %v881 = vmul.f32 %v880, %v878
        %v882 = vmul.f32 %v880, %v879
        %v883 = vadd.f32 %v858, %v881
        %v884 = vadd.f32 %v859, %v882
        %885 = vset.pattern.permute.xlu0 7
        %886 = vperm.xlu0 %885, %v670
        %v887 = vpop.permute.xlu0 %886
        %889 = vset.pattern.permute.xlu0 7
        %890 = vperm.xlu0 %889, %v673
        %v891 = vpop.permute.xlu0 %890
        %v893 = vlaneseq
        %v894 = vshrl.u32 %v893, 7
        %v895 = vsub.s32 7, %v894
        %v896 = vrot.slane %v692, %v895
        %v897 = vadd.f32 %v887, %v896
        %v898 = vadd.f32 %v891, %v896
        %s899 = sadd.s32 %s724, 7
        %s900 = sld [smem:[#allocation8 + %s899]]
        %v901 = vmul.f32 %v897, 0.2
        %v902 = vmul.f32 %v898, 0.2
        %v903 = vmax.f32 %v897, %v901
        %v904 = vmax.f32 %v898, %v902
        %v905 = vstv %s900
        %v906 = vmul.f32 %v905, %v903
        %v907 = vmul.f32 %v905, %v904
        %v908 = vadd.f32 %v883, %v906
        %v909 = vadd.f32 %v884, %v907
        %910 = vset.pattern.permute.xlu0 8
        %911 = vperm.xlu0 %910, %v670
        %v912 = vpop.permute.xlu0 %911
        %914 = vset.pattern.permute.xlu0 8
        %915 = vperm.xlu0 %914, %v673
        %v916 = vpop.permute.xlu0 %915
        %v918 = vlaneseq
        %v919 = vshrl.u32 %v918, 7
        %v920 = vsub.s32 0, %v919
        %v921 = vrot.slane %v693, %v920
        %v922 = vadd.f32 %v912, %v921
        %v923 = vadd.f32 %v916, %v921
        %s924 = sadd.s32 %s724, 8
        %s925 = sld [smem:[#allocation8 + %s924]]
        %v926 = vmul.f32 %v922, 0.2
        %v927 = vmul.f32 %v923, 0.2
        %v928 = vmax.f32 %v922, %v926
        %v929 = vmax.f32 %v923, %v927
        %v930 = vstv %s925
        %v931 = vmul.f32 %v930, %v928
        %v932 = vmul.f32 %v930, %v929
        %v933 = vadd.f32 %v908, %v931
        %v934 = vadd.f32 %v909, %v932
        %935 = vset.pattern.permute.xlu0 9
        %936 = vperm.xlu0 %935, %v670
        %v937 = vpop.permute.xlu0 %936
        %939 = vset.pattern.permute.xlu0 9
        %940 = vperm.xlu0 %939, %v673
        %v941 = vpop.permute.xlu0 %940
        %v943 = vlaneseq
        %v944 = vshrl.u32 %v943, 7
        %v945 = vsub.s32 1, %v944
        %v946 = vrot.slane %v693, %v945
        %v947 = vadd.f32 %v937, %v946
        %v948 = vadd.f32 %v941, %v946
        %s949 = sadd.s32 %s724, 9
        %s950 = sld [smem:[#allocation8 + %s949]]
        %v951 = vmul.f32 %v947, 0.2
        %v952 = vmul.f32 %v948, 0.2
        %v953 = vmax.f32 %v947, %v951
        %v954 = vmax.f32 %v948, %v952
        %v955 = vstv %s950
        %v956 = vmul.f32 %v955, %v953
        %v957 = vmul.f32 %v955, %v954
        %v958 = vadd.f32 %v933, %v956
        %v959 = vadd.f32 %v934, %v957
        %960 = vset.pattern.permute.xlu0 10
        %961 = vperm.xlu0 %960, %v670
        %v962 = vpop.permute.xlu0 %961
        %964 = vset.pattern.permute.xlu0 10
        %965 = vperm.xlu0 %964, %v673
        %v966 = vpop.permute.xlu0 %965
        %v968 = vlaneseq
        %v969 = vshrl.u32 %v968, 7
        %v970 = vsub.s32 2, %v969
        %v971 = vrot.slane %v693, %v970
        %v972 = vadd.f32 %v962, %v971
        %v973 = vadd.f32 %v966, %v971
        %s974 = sadd.s32 %s724, 10
        %s975 = sld [smem:[#allocation8 + %s974]]
        %v976 = vmul.f32 %v972, 0.2
        %v977 = vmul.f32 %v973, 0.2
        %v978 = vmax.f32 %v972, %v976
        %v979 = vmax.f32 %v973, %v977
        %v980 = vstv %s975
        %v981 = vmul.f32 %v980, %v978
        %v982 = vmul.f32 %v980, %v979
        %v983 = vadd.f32 %v958, %v981
        %v984 = vadd.f32 %v959, %v982
        %985 = vset.pattern.permute.xlu0 11
        %986 = vperm.xlu0 %985, %v670
        %v987 = vpop.permute.xlu0 %986
        %989 = vset.pattern.permute.xlu0 11
        %990 = vperm.xlu0 %989, %v673
        %v991 = vpop.permute.xlu0 %990
        %v993 = vlaneseq
        %v994 = vshrl.u32 %v993, 7
        %v995 = vsub.s32 3, %v994
        %v996 = vrot.slane %v693, %v995
        %v997 = vadd.f32 %v987, %v996
        %v998 = vadd.f32 %v991, %v996
        %s999 = sadd.s32 %s724, 11
        %s1000 = sld [smem:[#allocation8 + %s999]]
        %v1001 = vmul.f32 %v997, 0.2
        %v1002 = vmul.f32 %v998, 0.2
        %v1003 = vmax.f32 %v997, %v1001
        %v1004 = vmax.f32 %v998, %v1002
        %v1005 = vstv %s1000
        %v1006 = vmul.f32 %v1005, %v1003
        %v1007 = vmul.f32 %v1005, %v1004
        %v1008 = vadd.f32 %v983, %v1006
        %v1009 = vadd.f32 %v984, %v1007
        %1010 = vset.pattern.permute.xlu0 12
        %1011 = vperm.xlu0 %1010, %v670
        %v1012 = vpop.permute.xlu0 %1011
        %1014 = vset.pattern.permute.xlu0 12
        %1015 = vperm.xlu0 %1014, %v673
        %v1016 = vpop.permute.xlu0 %1015
        %v1018 = vlaneseq
        %v1019 = vshrl.u32 %v1018, 7
        %v1020 = vsub.s32 4, %v1019
        %v1021 = vrot.slane %v693, %v1020
        %v1022 = vadd.f32 %v1012, %v1021
        %v1023 = vadd.f32 %v1016, %v1021
        %s1024 = sadd.s32 %s724, 12
        %s1025 = sld [smem:[#allocation8 + %s1024]]
        %v1026 = vmul.f32 %v1022, 0.2
        %v1027 = vmul.f32 %v1023, 0.2
        %v1028 = vmax.f32 %v1022, %v1026
        %v1029 = vmax.f32 %v1023, %v1027
        %v1030 = vstv %s1025
        %v1031 = vmul.f32 %v1030, %v1028
        %v1032 = vmul.f32 %v1030, %v1029
        %v1033 = vadd.f32 %v1008, %v1031
        %v1034 = vadd.f32 %v1009, %v1032
        %1035 = vset.pattern.permute.xlu0 13
        %1036 = vperm.xlu0 %1035, %v670
        %v1037 = vpop.permute.xlu0 %1036
        %1039 = vset.pattern.permute.xlu0 13
        %1040 = vperm.xlu0 %1039, %v673
        %v1041 = vpop.permute.xlu0 %1040
        %v1043 = vlaneseq
        %v1044 = vshrl.u32 %v1043, 7
        %v1045 = vsub.s32 5, %v1044
        %v1046 = vrot.slane %v693, %v1045
        %v1047 = vadd.f32 %v1037, %v1046
        %v1048 = vadd.f32 %v1041, %v1046
        %s1049 = sadd.s32 %s724, 13
        %s1050 = sld [smem:[#allocation8 + %s1049]]
        %v1051 = vmul.f32 %v1047, 0.2
        %v1052 = vmul.f32 %v1048, 0.2
        %v1053 = vmax.f32 %v1047, %v1051
        %v1054 = vmax.f32 %v1048, %v1052
        %v1055 = vstv %s1050
        %v1056 = vmul.f32 %v1055, %v1053
        %v1057 = vmul.f32 %v1055, %v1054
        %v1058 = vadd.f32 %v1033, %v1056
        %v1059 = vadd.f32 %v1034, %v1057
        %1060 = vset.pattern.permute.xlu0 14
        %1061 = vperm.xlu0 %1060, %v670
        %v1062 = vpop.permute.xlu0 %1061
        %1064 = vset.pattern.permute.xlu0 14
        %1065 = vperm.xlu0 %1064, %v673
        %v1066 = vpop.permute.xlu0 %1065
        %v1068 = vlaneseq
        %v1069 = vshrl.u32 %v1068, 7
        %v1070 = vsub.s32 6, %v1069
        %v1071 = vrot.slane %v693, %v1070
        %v1072 = vadd.f32 %v1062, %v1071
        %v1073 = vadd.f32 %v1066, %v1071
        %s1074 = sadd.s32 %s724, 14
        %s1075 = sld [smem:[#allocation8 + %s1074]]
        %v1076 = vmul.f32 %v1072, 0.2
        %v1077 = vmul.f32 %v1073, 0.2
        %v1078 = vmax.f32 %v1072, %v1076
        %v1079 = vmax.f32 %v1073, %v1077
        %v1080 = vstv %s1075
        %v1081 = vmul.f32 %v1080, %v1078
        %v1082 = vmul.f32 %v1080, %v1079
        %v1083 = vadd.f32 %v1058, %v1081
        %v1084 = vadd.f32 %v1059, %v1082
        %1085 = vset.pattern.permute.xlu0 15
        %1086 = vperm.xlu0 %1085, %v670
        %v1087 = vpop.permute.xlu0 %1086
        %1089 = vset.pattern.permute.xlu0 15
        %1090 = vperm.xlu0 %1089, %v673
        %v1091 = vpop.permute.xlu0 %1090
        %v1093 = vlaneseq
        %v1094 = vshrl.u32 %v1093, 7
        %v1095 = vsub.s32 7, %v1094
        %v1096 = vrot.slane %v693, %v1095
        %v1097 = vadd.f32 %v1087, %v1096
        %v1098 = vadd.f32 %v1091, %v1096
        %s1099 = sadd.s32 %s724, 15
        %s1100 = sld [smem:[#allocation8 + %s1099]]
        %v1101 = vmul.f32 %v1097, 0.2
        %v1102 = vmul.f32 %v1098, 0.2
        %v1103 = vmax.f32 %v1097, %v1101
        %v1104 = vmax.f32 %v1098, %v1102
        %v1105 = vstv %s1100
        %v1106 = vmul.f32 %v1105, %v1103
        %v1107 = vmul.f32 %v1105, %v1104
        %v1108 = vadd.f32 %v1083, %v1106
        %v1109 = vadd.f32 %v1084, %v1107
        %1110 = vset.pattern.permute.xlu0 16
        %1111 = vperm.xlu0 %1110, %v670
        %v1112 = vpop.permute.xlu0 %1111
        %1114 = vset.pattern.permute.xlu0 16
        %1115 = vperm.xlu0 %1114, %v673
        %v1116 = vpop.permute.xlu0 %1115
        %v1118 = vlaneseq
        %v1119 = vshrl.u32 %v1118, 7
        %v1120 = vsub.s32 0, %v1119
        %v1121 = vrot.slane %v694, %v1120
        %v1122 = vadd.f32 %v1112, %v1121
        %v1123 = vadd.f32 %v1116, %v1121
        %s1124 = sadd.s32 %s724, 16
        %s1125 = sld [smem:[#allocation8 + %s1124]]
        %v1126 = vmul.f32 %v1122, 0.2
        %v1127 = vmul.f32 %v1123, 0.2
        %v1128 = vmax.f32 %v1122, %v1126
        %v1129 = vmax.f32 %v1123, %v1127
        %v1130 = vstv %s1125
        %v1131 = vmul.f32 %v1130, %v1128
        %v1132 = vmul.f32 %v1130, %v1129
        %v1133 = vadd.f32 %v1108, %v1131
        %v1134 = vadd.f32 %v1109, %v1132
        %1135 = vset.pattern.permute.xlu0 17
        %1136 = vperm.xlu0 %1135, %v670
        %v1137 = vpop.permute.xlu0 %1136
        %1139 = vset.pattern.permute.xlu0 17
        %1140 = vperm.xlu0 %1139, %v673
        %v1141 = vpop.permute.xlu0 %1140
        %v1143 = vlaneseq
        %v1144 = vshrl.u32 %v1143, 7
        %v1145 = vsub.s32 1, %v1144
        %v1146 = vrot.slane %v694, %v1145
        %v1147 = vadd.f32 %v1137, %v1146
        %v1148 = vadd.f32 %v1141, %v1146
        %s1149 = sadd.s32 %s724, 17
        %s1150 = sld [smem:[#allocation8 + %s1149]]
        %v1151 = vmul.f32 %v1147, 0.2
        %v1152 = vmul.f32 %v1148, 0.2
        %v1153 = vmax.f32 %v1147, %v1151
        %v1154 = vmax.f32 %v1148, %v1152
        %v1155 = vstv %s1150
        %v1156 = vmul.f32 %v1155, %v1153
        %v1157 = vmul.f32 %v1155, %v1154
        %v1158 = vadd.f32 %v1133, %v1156
        %v1159 = vadd.f32 %v1134, %v1157
        %1160 = vset.pattern.permute.xlu0 18
        %1161 = vperm.xlu0 %1160, %v670
        %v1162 = vpop.permute.xlu0 %1161
        %1164 = vset.pattern.permute.xlu0 18
        %1165 = vperm.xlu0 %1164, %v673
        %v1166 = vpop.permute.xlu0 %1165
        %v1168 = vlaneseq
        %v1169 = vshrl.u32 %v1168, 7
        %v1170 = vsub.s32 2, %v1169
        %v1171 = vrot.slane %v694, %v1170
        %v1172 = vadd.f32 %v1162, %v1171
        %v1173 = vadd.f32 %v1166, %v1171
        %s1174 = sadd.s32 %s724, 18
        %s1175 = sld [smem:[#allocation8 + %s1174]]
        %v1176 = vmul.f32 %v1172, 0.2
        %v1177 = vmul.f32 %v1173, 0.2
        %v1178 = vmax.f32 %v1172, %v1176
        %v1179 = vmax.f32 %v1173, %v1177
        %v1180 = vstv %s1175
        %v1181 = vmul.f32 %v1180, %v1178
        %v1182 = vmul.f32 %v1180, %v1179
        %v1183 = vadd.f32 %v1158, %v1181
        %v1184 = vadd.f32 %v1159, %v1182
        %1185 = vset.pattern.permute.xlu0 19
        %1186 = vperm.xlu0 %1185, %v670
        %v1187 = vpop.permute.xlu0 %1186
        %1189 = vset.pattern.permute.xlu0 19
        %1190 = vperm.xlu0 %1189, %v673
        %v1191 = vpop.permute.xlu0 %1190
        %v1193 = vlaneseq
        %v1194 = vshrl.u32 %v1193, 7
        %v1195 = vsub.s32 3, %v1194
        %v1196 = vrot.slane %v694, %v1195
        %v1197 = vadd.f32 %v1187, %v1196
        %v1198 = vadd.f32 %v1191, %v1196
        %s1199 = sadd.s32 %s724, 19
        %s1200 = sld [smem:[#allocation8 + %s1199]]
        %v1201 = vmul.f32 %v1197, 0.2
        %v1202 = vmul.f32 %v1198, 0.2
        %v1203 = vmax.f32 %v1197, %v1201
        %v1204 = vmax.f32 %v1198, %v1202
        %v1205 = vstv %s1200
        %v1206 = vmul.f32 %v1205, %v1203
        %v1207 = vmul.f32 %v1205, %v1204
        %v1208 = vadd.f32 %v1183, %v1206
        %v1209 = vadd.f32 %v1184, %v1207
        %1210 = vset.pattern.permute.xlu0 20
        %1211 = vperm.xlu0 %1210, %v670
        %v1212 = vpop.permute.xlu0 %1211
        %1214 = vset.pattern.permute.xlu0 20
        %1215 = vperm.xlu0 %1214, %v673
        %v1216 = vpop.permute.xlu0 %1215
        %v1218 = vlaneseq
        %v1219 = vshrl.u32 %v1218, 7
        %v1220 = vsub.s32 4, %v1219
        %v1221 = vrot.slane %v694, %v1220
        %v1222 = vadd.f32 %v1212, %v1221
        %v1223 = vadd.f32 %v1216, %v1221
        %s1224 = sadd.s32 %s724, 20
        %s1225 = sld [smem:[#allocation8 + %s1224]]
        %v1226 = vmul.f32 %v1222, 0.2
        %v1227 = vmul.f32 %v1223, 0.2
        %v1228 = vmax.f32 %v1222, %v1226
        %v1229 = vmax.f32 %v1223, %v1227
        %v1230 = vstv %s1225
        %v1231 = vmul.f32 %v1230, %v1228
        %v1232 = vmul.f32 %v1230, %v1229
        %v1233 = vadd.f32 %v1208, %v1231
        %v1234 = vadd.f32 %v1209, %v1232
        %1235 = vset.pattern.permute.xlu0 21
        %1236 = vperm.xlu0 %1235, %v670
        %v1237 = vpop.permute.xlu0 %1236
        %1239 = vset.pattern.permute.xlu0 21
        %1240 = vperm.xlu0 %1239, %v673
        %v1241 = vpop.permute.xlu0 %1240
        %v1243 = vlaneseq
        %v1244 = vshrl.u32 %v1243, 7
        %v1245 = vsub.s32 5, %v1244
        %v1246 = vrot.slane %v694, %v1245
        %v1247 = vadd.f32 %v1237, %v1246
        %v1248 = vadd.f32 %v1241, %v1246
        %s1249 = sadd.s32 %s724, 21
        %s1250 = sld [smem:[#allocation8 + %s1249]]
        %v1251 = vmul.f32 %v1247, 0.2
        %v1252 = vmul.f32 %v1248, 0.2
        %v1253 = vmax.f32 %v1247, %v1251
        %v1254 = vmax.f32 %v1248, %v1252
        %v1255 = vstv %s1250
        %v1256 = vmul.f32 %v1255, %v1253
        %v1257 = vmul.f32 %v1255, %v1254
        %v1258 = vadd.f32 %v1233, %v1256
        %v1259 = vadd.f32 %v1234, %v1257
        %1260 = vset.pattern.permute.xlu0 22
        %1261 = vperm.xlu0 %1260, %v670
        %v1262 = vpop.permute.xlu0 %1261
        %1264 = vset.pattern.permute.xlu0 22
        %1265 = vperm.xlu0 %1264, %v673
        %v1266 = vpop.permute.xlu0 %1265
        %v1268 = vlaneseq
        %v1269 = vshrl.u32 %v1268, 7
        %v1270 = vsub.s32 6, %v1269
        %v1271 = vrot.slane %v694, %v1270
        %v1272 = vadd.f32 %v1262, %v1271
        %v1273 = vadd.f32 %v1266, %v1271
        %s1274 = sadd.s32 %s724, 22
        %s1275 = sld [smem:[#allocation8 + %s1274]]
        %v1276 = vmul.f32 %v1272, 0.2
        %v1277 = vmul.f32 %v1273, 0.2
        %v1278 = vmax.f32 %v1272, %v1276
        %v1279 = vmax.f32 %v1273, %v1277
        %v1280 = vstv %s1275
        %v1281 = vmul.f32 %v1280, %v1278
        %v1282 = vmul.f32 %v1280, %v1279
        %v1283 = vadd.f32 %v1258, %v1281
        %v1284 = vadd.f32 %v1259, %v1282
        %1285 = vset.pattern.permute.xlu0 23
        %1286 = vperm.xlu0 %1285, %v670
        %v1287 = vpop.permute.xlu0 %1286
        %1289 = vset.pattern.permute.xlu0 23
        %1290 = vperm.xlu0 %1289, %v673
        %v1291 = vpop.permute.xlu0 %1290
        %v1293 = vlaneseq
        %v1294 = vshrl.u32 %v1293, 7
        %v1295 = vsub.s32 7, %v1294
        %v1296 = vrot.slane %v694, %v1295
        %v1297 = vadd.f32 %v1287, %v1296
        %v1298 = vadd.f32 %v1291, %v1296
        %s1299 = sadd.s32 %s724, 23
        %s1300 = sld [smem:[#allocation8 + %s1299]]
        %v1301 = vmul.f32 %v1297, 0.2
        %v1302 = vmul.f32 %v1298, 0.2
        %v1303 = vmax.f32 %v1297, %v1301
        %v1304 = vmax.f32 %v1298, %v1302
        %v1305 = vstv %s1300
        %v1306 = vmul.f32 %v1305, %v1303
        %v1307 = vmul.f32 %v1305, %v1304
        %v1308 = vadd.f32 %v1283, %v1306
        %v1309 = vadd.f32 %v1284, %v1307
        %1310 = vset.pattern.permute.xlu0 24
        %1311 = vperm.xlu0 %1310, %v670
        %v1312 = vpop.permute.xlu0 %1311
        %1314 = vset.pattern.permute.xlu0 24
        %1315 = vperm.xlu0 %1314, %v673
        %v1316 = vpop.permute.xlu0 %1315
        %v1318 = vlaneseq
        %v1319 = vshrl.u32 %v1318, 7
        %v1320 = vsub.s32 0, %v1319
        %v1321 = vrot.slane %v695, %v1320
        %v1322 = vadd.f32 %v1312, %v1321
        %v1323 = vadd.f32 %v1316, %v1321
        %s1324 = sadd.s32 %s724, 24
        %s1325 = sld [smem:[#allocation8 + %s1324]]
        %v1326 = vmul.f32 %v1322, 0.2
        %v1327 = vmul.f32 %v1323, 0.2
        %v1328 = vmax.f32 %v1322, %v1326
        %v1329 = vmax.f32 %v1323, %v1327
        %v1330 = vstv %s1325
        %v1331 = vmul.f32 %v1330, %v1328
        %v1332 = vmul.f32 %v1330, %v1329
        %v1333 = vadd.f32 %v1308, %v1331
        %v1334 = vadd.f32 %v1309, %v1332
        %1335 = vset.pattern.permute.xlu0 25
        %1336 = vperm.xlu0 %1335, %v670
        %v1337 = vpop.permute.xlu0 %1336
        %1339 = vset.pattern.permute.xlu0 25
        %1340 = vperm.xlu0 %1339, %v673
        %v1341 = vpop.permute.xlu0 %1340
        %v1343 = vlaneseq
        %v1344 = vshrl.u32 %v1343, 7
        %v1345 = vsub.s32 1, %v1344
        %v1346 = vrot.slane %v695, %v1345
        %v1347 = vadd.f32 %v1337, %v1346
        %v1348 = vadd.f32 %v1341, %v1346
        %s1349 = sadd.s32 %s724, 25
        %s1350 = sld [smem:[#allocation8 + %s1349]]
        %v1351 = vmul.f32 %v1347, 0.2
        %v1352 = vmul.f32 %v1348, 0.2
        %v1353 = vmax.f32 %v1347, %v1351
        %v1354 = vmax.f32 %v1348, %v1352
        %v1355 = vstv %s1350
        %v1356 = vmul.f32 %v1355, %v1353
        %v1357 = vmul.f32 %v1355, %v1354
        %v1358 = vadd.f32 %v1333, %v1356
        %v1359 = vadd.f32 %v1334, %v1357
        %1360 = vset.pattern.permute.xlu0 26
        %1361 = vperm.xlu0 %1360, %v670
        %v1362 = vpop.permute.xlu0 %1361
        %1364 = vset.pattern.permute.xlu0 26
        %1365 = vperm.xlu0 %1364, %v673
        %v1366 = vpop.permute.xlu0 %1365
        %v1368 = vlaneseq
        %v1369 = vshrl.u32 %v1368, 7
        %v1370 = vsub.s32 2, %v1369
        %v1371 = vrot.slane %v695, %v1370
        %v1372 = vadd.f32 %v1362, %v1371
        %v1373 = vadd.f32 %v1366, %v1371
        %s1374 = sadd.s32 %s724, 26
        %s1375 = sld [smem:[#allocation8 + %s1374]]
        %v1376 = vmul.f32 %v1372, 0.2
        %v1377 = vmul.f32 %v1373, 0.2
        %v1378 = vmax.f32 %v1372, %v1376
        %v1379 = vmax.f32 %v1373, %v1377
        %v1380 = vstv %s1375
        %v1381 = vmul.f32 %v1380, %v1378
        %v1382 = vmul.f32 %v1380, %v1379
        %v1383 = vadd.f32 %v1358, %v1381
        %v1384 = vadd.f32 %v1359, %v1382
        %1385 = vset.pattern.permute.xlu0 27
        %1386 = vperm.xlu0 %1385, %v670
        %v1387 = vpop.permute.xlu0 %1386
        %1389 = vset.pattern.permute.xlu0 27
        %1390 = vperm.xlu0 %1389, %v673
        %v1391 = vpop.permute.xlu0 %1390
        %v1393 = vlaneseq
        %v1394 = vshrl.u32 %v1393, 7
        %v1395 = vsub.s32 3, %v1394
        %v1396 = vrot.slane %v695, %v1395
        %v1397 = vadd.f32 %v1387, %v1396
        %v1398 = vadd.f32 %v1391, %v1396
        %s1399 = sadd.s32 %s724, 27
        %s1400 = sld [smem:[#allocation8 + %s1399]]
        %v1401 = vmul.f32 %v1397, 0.2
        %v1402 = vmul.f32 %v1398, 0.2
        %v1403 = vmax.f32 %v1397, %v1401
        %v1404 = vmax.f32 %v1398, %v1402
        %v1405 = vstv %s1400
        %v1406 = vmul.f32 %v1405, %v1403
        %v1407 = vmul.f32 %v1405, %v1404
        %v1408 = vadd.f32 %v1383, %v1406
        %v1409 = vadd.f32 %v1384, %v1407
        %1410 = vset.pattern.permute.xlu0 28
        %1411 = vperm.xlu0 %1410, %v670
        %v1412 = vpop.permute.xlu0 %1411
        %1414 = vset.pattern.permute.xlu0 28
        %1415 = vperm.xlu0 %1414, %v673
        %v1416 = vpop.permute.xlu0 %1415
        %v1418 = vlaneseq
        %v1419 = vshrl.u32 %v1418, 7
        %v1420 = vsub.s32 4, %v1419
        %v1421 = vrot.slane %v695, %v1420
        %v1422 = vadd.f32 %v1412, %v1421
        %v1423 = vadd.f32 %v1416, %v1421
        %s1424 = sadd.s32 %s724, 28
        %s1425 = sld [smem:[#allocation8 + %s1424]]
        %v1426 = vmul.f32 %v1422, 0.2
        %v1427 = vmul.f32 %v1423, 0.2
        %v1428 = vmax.f32 %v1422, %v1426
        %v1429 = vmax.f32 %v1423, %v1427
        %v1430 = vstv %s1425
        %v1431 = vmul.f32 %v1430, %v1428
        %v1432 = vmul.f32 %v1430, %v1429
        %v1433 = vadd.f32 %v1408, %v1431
        %v1434 = vadd.f32 %v1409, %v1432
        %1435 = vset.pattern.permute.xlu0 29
        %1436 = vperm.xlu0 %1435, %v670
        %v1437 = vpop.permute.xlu0 %1436
        %1439 = vset.pattern.permute.xlu0 29
        %1440 = vperm.xlu0 %1439, %v673
        %v1441 = vpop.permute.xlu0 %1440
        %v1443 = vlaneseq
        %v1444 = vshrl.u32 %v1443, 7
        %v1445 = vsub.s32 5, %v1444
        %v1446 = vrot.slane %v695, %v1445
        %v1447 = vadd.f32 %v1437, %v1446
        %v1448 = vadd.f32 %v1441, %v1446
        %s1449 = sadd.s32 %s724, 29
        %s1450 = sld [smem:[#allocation8 + %s1449]]
        %v1451 = vmul.f32 %v1447, 0.2
        %v1452 = vmul.f32 %v1448, 0.2
        %v1453 = vmax.f32 %v1447, %v1451
        %v1454 = vmax.f32 %v1448, %v1452
        %v1455 = vstv %s1450
        %v1456 = vmul.f32 %v1455, %v1453
        %v1457 = vmul.f32 %v1455, %v1454
        %v1458 = vadd.f32 %v1433, %v1456
        %v1459 = vadd.f32 %v1434, %v1457
        %1460 = vset.pattern.permute.xlu0 30
        %1461 = vperm.xlu0 %1460, %v670
        %v1462 = vpop.permute.xlu0 %1461
        %1464 = vset.pattern.permute.xlu0 30
        %1465 = vperm.xlu0 %1464, %v673
        %v1466 = vpop.permute.xlu0 %1465
        %v1468 = vlaneseq
        %v1469 = vshrl.u32 %v1468, 7
        %v1470 = vsub.s32 6, %v1469
        %v1471 = vrot.slane %v695, %v1470
        %v1472 = vadd.f32 %v1462, %v1471
        %v1473 = vadd.f32 %v1466, %v1471
        %s1474 = sadd.s32 %s724, 30
        %s1475 = sld [smem:[#allocation8 + %s1474]]
        %v1476 = vmul.f32 %v1472, 0.2
        %v1477 = vmul.f32 %v1473, 0.2
        %v1478 = vmax.f32 %v1472, %v1476
        %v1479 = vmax.f32 %v1473, %v1477
        %v1480 = vstv %s1475
        %v1481 = vmul.f32 %v1480, %v1478
        %v1482 = vmul.f32 %v1480, %v1479
        %v1483 = vadd.f32 %v1458, %v1481
        %v1484 = vadd.f32 %v1459, %v1482
        %1485 = vset.pattern.permute.xlu0 31
        %1486 = vperm.xlu0 %1485, %v670
        %v1487 = vpop.permute.xlu0 %1486
        %1489 = vset.pattern.permute.xlu0 31
        %1490 = vperm.xlu0 %1489, %v673
        %v1491 = vpop.permute.xlu0 %1490
        %v1493 = vlaneseq
        %v1494 = vshrl.u32 %v1493, 7
        %v1495 = vsub.s32 7, %v1494
        %v1496 = vrot.slane %v695, %v1495
        %v1497 = vadd.f32 %v1487, %v1496
        %v1498 = vadd.f32 %v1491, %v1496
        %s1499 = sadd.s32 %s724, 31
        %s1500 = sld [smem:[#allocation8 + %s1499]]
        %v1501 = vmul.f32 %v1497, 0.2
        %v1502 = vmul.f32 %v1498, 0.2
        %v1503 = vmax.f32 %v1497, %v1501
        %v1504 = vmax.f32 %v1498, %v1502
        %v1505 = vstv %s1500
        %v1506 = vmul.f32 %v1505, %v1503
        %v1507 = vmul.f32 %v1505, %v1504
        %v1508 = vadd.f32 %v1483, %v1506
        %v1509 = vadd.f32 %v1484, %v1507
        %vm1510 = vcmp.gt.f32.partialorder %v548, 0.0
        %vm1511 = vcmp.gt.f32.partialorder %v549, 0.0
        %v1512 = vsel %vm1510, %v1508, -1e+30
        %v1513 = vsel %vm1511, %v1509, -1e+30
        %v1514 = vsel %vm570, %v1512, -inf
        %1515 = vmax.xlane.f32.xlu0 %v1514
        %v1516 = vpop.xlane.xlu0 %1515
        %v1517 = vsel %vm570, %v1513, -inf
        %1518 = vmax.xlane.f32.xlu0 %v1517
        %v1519 = vpop.xlane.xlu0 %1518
        %v1520 = vsub.f32 %v1512, %v1516
        %v1521 = vsub.f32 %v1513, %v1519
        %v1522 = vmul.f32 %v1520, 1.442695
        %v1523 = vpow.pop %v1522
        %v1524 = vmul.f32 %v1521, 1.442695
        %v1525 = vpow.pop %v1524
        %v1526 = vmul.f32 %v1523, %v548
        %v1527 = vmul.f32 %v1525, %v549
        %v1528 = vsel %vm570, %v1526, 0.0
        %1529 = vadd.xlane.f32.xlu0 %v1528
        %v1530 = vpop.xlane.xlu0 %1529
        %v1531 = vsel %vm570, %v1527, 0.0
        %1532 = vadd.xlane.f32.xlu0 %v1531
        %v1533 = vpop.xlane.xlu0 %1532
        %v1534 = vmax.f32 %v1530, 1e-30
        %v1535 = vmax.f32 %v1533, 1e-30
        %v1536 = vrcp.pop %v1534
        %v1537 = vrcp.pop %v1535
        %v1538 = vmul.f32 %v1526, %v1536
        %v1539 = vmul.f32 %v1527, %v1537
        %v1540 = vld [vmem:[#allocation2] sm:$0xff]
        %v1541 = vld [vmem:[#allocation2 + $0x8] sm:$0xff]
        %v1542 = vpack.c.bf16 %v1539, %v1538
        %v1543 = vpack.c.bf16 %v612, %v609
        %v1544 = vlaneseq
        %v1545 = vshrl.u32 %v1544, 7
        %v1546 = vsub.s32 0, %v1545
        %v1547 = vrot.slane %v552, %v1546
        %v1549 = vsel %vm570, %v1542, 0
        %1551 = vmatprep.subr.bf16.mxu0 0
        %1552 = vmatpush1.bf16.msra.mxu0 %v1543
        %1553 = vmatprep.subr.bf16.mxu0 0
        %1554 = vmatpush1.bf16.msra.mxu0 0
        %1555 = vmatprep.subr.bf16.mxu0 0
        %1556 = vmatpush1.bf16.msra.mxu0 0
        %1557 = vmatprep.subr.bf16.mxu0 0
        %1558 = vmatpush1.bf16.msra.mxu0 0
        %1559 = vmatprep.subr.bf16.mxu0 0
        %1560 = vmatpush1.bf16.msra.mxu0 0
        %1561 = vmatprep.subr.bf16.mxu0 0
        %1562 = vmatpush1.bf16.msra.mxu0 0
        %1563 = vmatprep.subr.bf16.mxu0 0
        %1564 = vmatpush1.bf16.msra.mxu0 0
        %1565 = vmatprep.subr.bf16.mxu0 0
        %1566 = vmatpush1.bf16.msra.mxu0 0
        %1567 = vmatprep.subr.bf16.mxu0 0
        %1568 = vmatpush1.bf16.msra.mxu0 0
        %1569 = vmatprep.subr.bf16.mxu0 0
        %1570 = vmatpush1.bf16.msra.mxu0 0
        %1571 = vmatprep.subr.bf16.mxu0 0
        %1572 = vmatpush1.bf16.msra.mxu0 0
        %1573 = vmatprep.subr.bf16.mxu0 0
        %1574 = vmatpush1.bf16.msra.mxu0 0
        %1575 = vmatprep.subr.bf16.mxu0 0
        %1576 = vmatpush1.bf16.msra.mxu0 0
        %1577 = vmatprep.subr.bf16.mxu0 0
        %1578 = vmatpush1.bf16.msra.mxu0 0
        %1579 = vmatprep.subr.bf16.mxu0 0
        %1580 = vmatpush1.bf16.msra.mxu0 0
        %1581 = vmatprep.subr.bf16.mxu0 0
        %1582 = vmatpush1.bf16.msra.mxu0 0
        %1583 = vmatprep.mubr.bf16.mxu0 0
        %1584 = vmatmul.mubr.bf16.gmra.mrb[0].mxu0 %v1549
        %v1585 = vpop.f32.mrb[0].mxu0
        %v1586 = vadd.f32 %v1547, %v1585
        %v1587 = vpop.f32.mrb[0].mxu0
        %v1588 = vpop.f32.mrb[0].mxu0
        %v1589 = vadd.f32 %v1547, %v1588
        %v1590 = vpop.f32.mrb[0].mxu0
        %1591 = vdwg.mxu0
        %v1592 = vadd.f32 %v1540, %v1586
        %v1593 = vadd.f32 %v1541, %v1589
        %vm1594 = vcmask 261120
        %1595 = vst.msk [vmem:[#allocation2] sm:$0xff] %vm1594, %v1592
        %1596 = vst.msk [vmem:[#allocation2 + $0x8] sm:$0xff] %vm1594, %v1593
        %s1597 = sld [smem:[#allocation7 + %s54]]
        %p1598 = scmp.eq.s32.totalorder %s1597, 1
        // Predicated region
        $region81: #{tpu_custom_call.1} parent=47 // pred_check
          %p1599 = pneg %p1598
        $region82: #{tpu_custom_call.1} parent=47 // pred_check_branch
          %1601 = sbr.rel (%p1599) target = $region84
        $region83: #{tpu_custom_call.1} parent=47 // pred_region
          %v1602 = vld [vmem:[#allocation2] sm:$0xff]
          %v1603 = vld [vmem:[#allocation2 + $0x8] sm:$0xff]
          %v1604 = vmax.f32 %v1602, 0.0
          %v1605 = vmax.f32 %v1603, 0.0
          %v1606 = vpack.c.bf16 %v1605, %v1604
          %v1608 = vunpack.c.l.b16 %v1606
          %v1609 = vunpack.c.h.b16 %v1606
          %v1610 = vpack.c.b16 %v1608, %v1608
          %v1611 = vpack.c.b16 %v1609, %v1609
          %vm1614 = vcmask 257024
          %1615 = vst.msk [vmem:[%s529] sm:$0xf] %vm1614, %v1610
          %1616 = vst.msk [vmem:[%s529 + $0x4] sm:$0xf] %vm1614, %v1611
        $region84: #{tpu_custom_call.1} parent=47 // pred_fallthru
          _
        %s1617 = sand.u32 %s245, 1
        %s1618 = scalar_lea.sflag [#allocation10], %s1617
        %s1619 = sand.u32 %s245, 1
        %s1620 = smul.addr %s1619, 8
        %s1621 = scalar_lea.vmem [#allocation21], %s1620
        // Predicated region
        $region85: #{tpu_custom_call.1} parent=47 // pred_check
          %p1622 = pneg %p255
        $region86: #{tpu_custom_call.1} parent=47 // pred_check_branch
          %1624 = sbr.rel (%p1622) target = $region88
        $region87: #{tpu_custom_call.1} parent=47 // pred_region
          %s1625 = sld [smem:[#allocation4 + %s54]]
          %s1627 = ssub.s32 128, 128
          %1628 = vsyncadd %s1618, %s1627
          %s1629 = smul.addr %s1625, 2
          %s1630 = smul.addr %s1629, 64
          %s1631 = scalar_lea.hbm %s11, %s1630
          %s1632 = sshll.u32 %s1621, 4
          %s1633 = int_to_ptr.vmem [resolvable:$true] %s1632
          %1638 = dma.vmem_to_hbm [thread:$0]  %s1633, 128, %s1631, %s1618, 64, 64, 4
        $region88: #{tpu_custom_call.1} parent=47 // pred_fallthru
          _
      $region48: #{tpu_custom_call.1} parent=5 // pred_fallthru
        _
      %p1639 = scmp.le.s32.totalorder 2, %s49
      // Predicated region
      $region89: #{tpu_custom_call.1} parent=5 // pred_check
        %p1640 = pneg %p1639
      $region90: #{tpu_custom_call.1} parent=5 // pred_check_branch
        %1642 = sbr.rel (%p1640) target = $region92
      $region91: #{tpu_custom_call.1} parent=5 // pred_region
        %s1643 = ssub.s32 %s49, 2
        // Predicated region
        $region93: #{tpu_custom_call.1} parent=91 // pred_check
          %p1644 = pneg %p261
        $region94: #{tpu_custom_call.1} parent=91 // pred_check_branch
          %1646 = sbr.rel (%p1644) target = $region96
        $region95: #{tpu_custom_call.1} parent=91 // pred_region
          %s1647 = sand.u32 %s246, 1
          %s1648 = scalar_lea.sflag [#allocation10], %s1647
          %s1649 = sand.u32 %s246, 1
          %s1650 = smul.addr %s1649, 8
          %s1651 = scalar_lea.vmem [#allocation21], %s1650
          %1652 = dma.done %s1648, 128
        $region96: #{tpu_custom_call.1} parent=91 // pred_fallthru
          _
      $region92: #{tpu_custom_call.1} parent=5 // pred_fallthru
        _
    $region6: #{tpu_custom_call.1} parent=1 // loop_footer
      %s53 = sadd.s32 1, %s49
    $region7: #{tpu_custom_call.1} parent=1 // loop_footer_branch
      %48 = sbr.rel target = $region3
    $region8: #{tpu_custom_call.1} parent=1 // loop_exit
      _
    %1653 = vsyncpa [#allocation9], 1
    %s1654 = scalar_lea.sflag [#allocation9], 1
    %1655 = vsyncpa %s1654, 1
    %1656 = vsyncpa [#allocation14], 1
    %s1657 = scalar_lea.sflag [#allocation14], 1
    %1658 = vsyncpa %s1657, 1
    %1659 = vsyncpa [#allocation17], 1
    %s1660 = scalar_lea.sflag [#allocation17], 1
    %1661 = vsyncpa %s1660, 1
    %1662 = vsyncpa [#allocation20], 1
    %s1663 = scalar_lea.sflag [#allocation20], 1
    %1664 = vsyncpa %s1663, 1
    %1665 = vsyncpa [#allocation10], 1
    %s1666 = scalar_lea.sflag [#allocation10], 1
    %1667 = vsyncpa %s1666, 1
    %1668 = vsyncpa [#allocation11], 1
    %s1669 = scalar_lea.sflag [#allocation11], 1
    %1670 = vsyncpa %s1669, 1

</llo_original>
